<compile_context>
chip_gen: v7x
topology: tpu7x:2x2x1
jax: 0.10.0
libtpu: 0.0.40
codegen_flags: <defaults>
</compile_context>

<pallas_src>
import jax
import jax.numpy as jnp
from jax import lax
from jax.experimental import pallas as pl
from jax.experimental.pallas import tpu as pltpu


def _round_up(x, m):
    return (x + m - 1) // m * m


def lstm_seq_kernel(x_proj_ref, w_hh_ref, hs_ref):
    """Whole LSTM time recurrence in one kernel invocation.

    x_proj_ref : (S, Bp, 4*Hp)  x @ W_ih^T + (b_ih + b_hh), all timesteps
    w_hh_ref   : (Hp, 4*Hp)     hidden->gates weight (transposed, gate-blocked,
                                padded; padded rows/cols are zero)
    hs_ref     : (S, Bp, Hp)    all hidden states (kernel output)
    """
    S = x_proj_ref.shape[0]
    Bp = hs_ref.shape[1]
    Hp = hs_ref.shape[2]

    w_hh = w_hh_ref[...]  # hoisted: loaded once, reused across all steps

    def step(t, carry):
        h, c = carry
        # Only the recurrent matmul is on the serial critical path.
        gates = x_proj_ref[t] + jnp.dot(h, w_hh,
                                        preferred_element_type=jnp.float32)
        # PyTorch gate order i, f, g, o; each slice is a lane-aligned Hp block.
        i_g = jax.nn.sigmoid(gates[:, 0 * Hp:1 * Hp])
        f_g = jax.nn.sigmoid(gates[:, 1 * Hp:2 * Hp])
        g_g = jnp.tanh(gates[:, 2 * Hp:3 * Hp])
        o_g = jax.nn.sigmoid(gates[:, 3 * Hp:4 * Hp])
        c_new = f_g * c + i_g * g_g
        h_new = o_g * jnp.tanh(c_new)
        hs_ref[t] = h_new            # lane-dense (Bp, Hp) store into VMEM
        return (h_new, c_new)

    # PyTorch init_hidden(): zero h0 / c0.  Padded lanes stay exactly zero.
    h0 = jnp.zeros((Bp, Hp), jnp.float32)
    c0 = jnp.zeros((Bp, Hp), jnp.float32)
    lax.fori_loop(0, S, step, (h0, c0), unroll=True)


def rnn_forward(x, w_ih, w_hh, b_ih, b_hh, w_out, b_out):
    """x: (S, B, I).  Weights in PyTorch convention:
       w_ih (4H, I), w_hh (4H, H), b_ih/b_hh (4H,), w_out (O, H), b_out (O,)."""
    S, B, I = x.shape
    fourH, H = w_hh.shape
    O = w_out.shape[0]

    Bp = _round_up(B, 8)       # sublane tile for fp32
    Hp = _round_up(H, 128)     # lane tile -> lane-aligned gate blocks
    fourHp = 4 * Hp
    f32 = jnp.float32

    w_ih = jnp.asarray(w_ih, f32)
    w_hh = jnp.asarray(w_hh, f32)
    b = jnp.asarray(b_ih, f32) + jnp.asarray(b_hh, f32)

    # Gate-blocked, padded, transposed weights.
    # w_ih_t: (I, 4*Hp), column block g holds gate g (i,f,g,o), padded with 0.
    w_ih_t = jnp.pad(w_ih.reshape(4, H, I), ((0, 0), (0, Hp - H), (0, 0)))
    w_ih_t = w_ih_t.transpose(2, 0, 1).reshape(I, fourHp)
    # w_hh_t: (Hp, 4*Hp), padded rows (extra hidden units) and columns are 0.
    w_hh_t = jnp.pad(w_hh.reshape(4, H, H), ((0, 0), (0, Hp - H), (0, 0)))
    w_hh_t = w_hh_t.transpose(2, 0, 1).reshape(H, fourHp)
    w_hh_t = jnp.pad(w_hh_t, ((0, Hp - H), (0, 0)))
    b_pad = jnp.pad(b.reshape(4, H), ((0, 0), (0, Hp - H))).reshape(fourHp)

    # Hoisted input projection: one (S*Bp, I) x (I, 4*Hp) matmul, bias folded.
    x_pad = jnp.pad(x.astype(f32), ((0, 0), (0, Bp - B), (0, 0)))
    x_proj = (x_pad.reshape(S * Bp, I) @ w_ih_t + b_pad).reshape(S, Bp, fourHp)

    hs = pl.pallas_call(
        lstm_seq_kernel,
        out_shape=jax.ShapeDtypeStruct((S, Bp, Hp), f32),
        grid_spec=pltpu.PrefetchScalarGridSpec(
            num_scalar_prefetch=0,
            grid=(1,),                       # single invocation; loop is inside
            in_specs=[
                pl.BlockSpec((S, Bp, fourHp), lambda i: (0, 0, 0)),
                pl.BlockSpec((Hp, fourHp), lambda i: (0, 0)),
            ],
            out_specs=pl.BlockSpec((S, Bp, Hp), lambda i: (0, 0, 0)),
        ),
        compiler_params=pltpu.CompilerParams(
            dimension_semantics=("arbitrary",),
        ),
    )(x_proj, w_hh_t)

    # Batched output Linear: one matmul over all timesteps, then strip padding.
    h_all = hs[:, :B, :H].reshape(S * B, H)
    out = h_all @ jnp.asarray(w_out, f32).T + jnp.asarray(b_out, f32)
    return out.reshape(S, B, O).astype(x.dtype)


def reference_forward(x, w_ih, w_hh, b_ih, b_hh, w_out, b_out):
    """Pure-JAX reference of the same PyTorch semantics, for sanity check."""
    S, B, I = x.shape
    H = w_hh.shape[1]

    def step(carry, x_t):
        h, c = carry
        gates = x_t @ w_ih.T + h @ w_hh.T + b_ih + b_hh
        i = jax.nn.sigmoid(gates[:, 0 * H:1 * H])
        f = jax.nn.sigmoid(gates[:, 1 * H:2 * H])
        g = jnp.tanh(gates[:, 2 * H:3 * H])
        o = jax.nn.sigmoid(gates[:, 3 * H:4 * H])
        c_new = f * c + i * g
        h_new = o * jnp.tanh(c_new)
        return (h_new, c_new), h_new

    h0 = jnp.zeros((B, H), jnp.float32)
    c0 = jnp.zeros((B, H), jnp.float32)
    _, hs = jax.lax.scan(step, (h0, c0), x.astype(jnp.float32))
    return hs @ w_out.T + b_out


if __name__ == "__main__":
    # Small shapes implied by the module: seq=8, batch=2, input=16, hidden=32, output=8
    S, B, I, H, O = 8, 2, 16, 32, 8

    key = jax.random.PRNGKey(0)
    ks = jax.random.split(key, 7)
    scale = 1.0 / jnp.sqrt(H)
    w_ih = jax.random.uniform(ks[0], (4 * H, I), jnp.float32, -scale, scale)
    w_hh = jax.random.uniform(ks[1], (4 * H, H), jnp.float32, -scale, scale)
    b_ih = jax.random.uniform(ks[2], (4 * H,), jnp.float32, -scale, scale)
    b_hh = jax.random.uniform(ks[3], (4 * H,), jnp.float32, -scale, scale)
    w_out = jax.random.uniform(ks[4], (O, H), jnp.float32, -scale, scale)
    b_out = jax.random.uniform(ks[5], (O,), jnp.float32, -scale, scale)
    x = jax.random.normal(ks[6], (S, B, I), jnp.float32)

    out = rnn_forward(x, w_ih, w_hh, b_ih, b_hh, w_out, b_out)
    out = jax.block_until_ready(out)

    ref = reference_forward(x, w_ih, w_hh, b_ih, b_hh, w_out, b_out)
    assert out.shape == (S, B, O)
    assert jnp.allclose(out, ref, atol=1e-5, rtol=1e-5), float(
        jnp.max(jnp.abs(out - ref)))

    print("KERNEL_OK")
</pallas_src>

<mosaic_0001>
module attributes {stable_mosaic.version = 11 : i64} {
  func.func @lstm_seq_kernel(%arg0: i32, %arg1: memref<8x8x512xf32, #tpu.memory_space<vmem>>, %arg2: memref<128x512xf32, #tpu.memory_space<vmem>>, %arg3: memref<8x8x128xf32, #tpu.memory_space<vmem>>) attributes {dimension_semantics = [#tpu.dimension_semantics<arbitrary>], iteration_bounds = array<i64: 1>, scalar_prefetch = 0 : i64, scratch_operands = 0 : i64, tpu.core_type = #tpu.core_type<tc>, window_params = [{pipeline_mode = #tpu.pipeline_mode<synchronous>, transform_indices = @transform_0, window_bounds = array<i64: 8, 8, 512>}, {pipeline_mode = #tpu.pipeline_mode<synchronous>, transform_indices = @transform_1, window_bounds = array<i64: 128, 512>}, {pipeline_mode = #tpu.pipeline_mode<synchronous>, transform_indices = @transform_2, window_bounds = array<i64: 8, 8, 128>}]} {
    %c0 = arith.constant 0 : index
    %c0_0 = arith.constant 0 : index
    %0 = vector.load %arg2[%c0, %c0_0] : memref<128x512xf32, #tpu.memory_space<vmem>>, vector<128x512xf32>
    %cst = arith.constant 0.000000e+00 : f32
    %1 = vector.broadcast %cst : f32 to vector<8x128xf32>
    %cst_1 = arith.constant 0.000000e+00 : f32
    %2 = vector.broadcast %cst_1 : f32 to vector<8x128xf32>
    %c0_i32 = arith.constant 0 : i32
    %3 = arith.index_cast %c0_i32 : i32 to index
    %c0_2 = arith.constant 0 : index
    %c0_3 = arith.constant 0 : index
    %4 = vector.load %arg1[%3, %c0_2, %c0_3] : memref<8x8x512xf32, #tpu.memory_space<vmem>>, vector<1x8x512xf32>
    %5 = vector.shape_cast %4 : vector<1x8x512xf32> to vector<8x512xf32>
    %cst_4 = arith.constant dense<0.000000e+00> : vector<8x512xf32>
    %6 = tpu.matmul %1, %0, %cst_4 {dimension_numbers = #tpu.dot_dimension_numbers<[1], [0], [0], [1], [0, 0, 1, 1], [], []>} : vector<8x128xf32>, vector<128x512xf32>, vector<8x512xf32> -> vector<8x512xf32>
    %7 = arith.addf %5, %6 : vector<8x512xf32>
    %8 = vector.extract_strided_slice %7 {offsets = [0, 0], sizes = [8, 128], strides = [1, 1]} : vector<8x512xf32> to vector<8x128xf32>
    %9 = arith.negf %8 : vector<8x128xf32>
    %10 = math.exp %9 : vector<8x128xf32>
    %cst_5 = arith.constant 1.000000e+00 : f32
    %11 = vector.broadcast %cst_5 : f32 to vector<8x128xf32>
    %12 = arith.addf %11, %10 : vector<8x128xf32>
    %13 = arith.divf %11, %12 : vector<8x128xf32>
    %14 = vector.extract_strided_slice %7 {offsets = [0, 128], sizes = [8, 128], strides = [1, 1]} : vector<8x512xf32> to vector<8x128xf32>
    %15 = arith.negf %14 : vector<8x128xf32>
    %16 = math.exp %15 : vector<8x128xf32>
    %cst_6 = arith.constant 1.000000e+00 : f32
    %17 = vector.broadcast %cst_6 : f32 to vector<8x128xf32>
    %18 = arith.addf %17, %16 : vector<8x128xf32>
    %19 = arith.divf %17, %18 : vector<8x128xf32>
    %20 = vector.extract_strided_slice %7 {offsets = [0, 256], sizes = [8, 128], strides = [1, 1]} : vector<8x512xf32> to vector<8x128xf32>
    %21 = math.tanh %20 : vector<8x128xf32>
    %22 = vector.extract_strided_slice %7 {offsets = [0, 384], sizes = [8, 128], strides = [1, 1]} : vector<8x512xf32> to vector<8x128xf32>
    %23 = arith.negf %22 : vector<8x128xf32>
    %24 = math.exp %23 : vector<8x128xf32>
    %cst_7 = arith.constant 1.000000e+00 : f32
    %25 = vector.broadcast %cst_7 : f32 to vector<8x128xf32>
    %26 = arith.addf %25, %24 : vector<8x128xf32>
    %27 = arith.divf %25, %26 : vector<8x128xf32>
    %28 = arith.mulf %19, %2 : vector<8x128xf32>
    %29 = arith.mulf %13, %21 : vector<8x128xf32>
    %30 = arith.addf %28, %29 : vector<8x128xf32>
    %31 = math.tanh %30 : vector<8x128xf32>
    %32 = arith.mulf %27, %31 : vector<8x128xf32>
    %33 = arith.index_cast %c0_i32 : i32 to index
    %c0_8 = arith.constant 0 : index
    %c0_9 = arith.constant 0 : index
    %34 = vector.load %arg3[%33, %c0_8, %c0_9] : memref<8x8x128xf32, #tpu.memory_space<vmem>>, vector<1x8x128xf32>
    %35 = vector.shape_cast %34 : vector<1x8x128xf32> to vector<8x128xf32>
    %36 = vector.shape_cast %32 : vector<8x128xf32> to vector<1x8x128xf32>
    tpu.vector_store %arg3[%33, %c0_8, %c0_9], %36 {strides = array<i32>} : memref<8x8x128xf32, #tpu.memory_space<vmem>>, vector<1x8x128xf32>,
    %c1_i32 = arith.constant 1 : i32
    %37 = arith.index_cast %c1_i32 : i32 to index
    %c0_10 = arith.constant 0 : index
    %c0_11 = arith.constant 0 : index
    %38 = vector.load %arg1[%37, %c0_10, %c0_11] : memref<8x8x512xf32, #tpu.memory_space<vmem>>, vector<1x8x512xf32>
    %39 = vector.shape_cast %38 : vector<1x8x512xf32> to vector<8x512xf32>
    %cst_12 = arith.constant dense<0.000000e+00> : vector<8x512xf32>
    %40 = tpu.matmul %32, %0, %cst_12 {dimension_numbers = #tpu.dot_dimension_numbers<[1], [0], [0], [1], [0, 0, 1, 1], [], []>} : vector<8x128xf32>, vector<128x512xf32>, vector<8x512xf32> -> vector<8x512xf32>
    %41 = arith.addf %39, %40 : vector<8x512xf32>
    %42 = vector.extract_strided_slice %41 {offsets = [0, 0], sizes = [8, 128], strides = [1, 1]} : vector<8x512xf32> to vector<8x128xf32>
    %43 = arith.negf %42 : vector<8x128xf32>
    %44 = math.exp %43 : vector<8x128xf32>
    %cst_13 = arith.constant 1.000000e+00 : f32
    %45 = vector.broadcast %cst_13 : f32 to vector<8x128xf32>
    %46 = arith.addf %45, %44 : vector<8x128xf32>
    %47 = arith.divf %45, %46 : vector<8x128xf32>
    %48 = vector.extract_strided_slice %41 {offsets = [0, 128], sizes = [8, 128], strides = [1, 1]} : vector<8x512xf32> to vector<8x128xf32>
    %49 = arith.negf %48 : vector<8x128xf32>
    %50 = math.exp %49 : vector<8x128xf32>
    %cst_14 = arith.constant 1.000000e+00 : f32
    %51 = vector.broadcast %cst_14 : f32 to vector<8x128xf32>
    %52 = arith.addf %51, %50 : vector<8x128xf32>
    %53 = arith.divf %51, %52 : vector<8x128xf32>
    %54 = vector.extract_strided_slice %41 {offsets = [0, 256], sizes = [8, 128], strides = [1, 1]} : vector<8x512xf32> to vector<8x128xf32>
    %55 = math.tanh %54 : vector<8x128xf32>
    %56 = vector.extract_strided_slice %41 {offsets = [0, 384], sizes = [8, 128], strides = [1, 1]} : vector<8x512xf32> to vector<8x128xf32>
    %57 = arith.negf %56 : vector<8x128xf32>
    %58 = math.exp %57 : vector<8x128xf32>
    %cst_15 = arith.constant 1.000000e+00 : f32
    %59 = vector.broadcast %cst_15 : f32 to vector<8x128xf32>
    %60 = arith.addf %59, %58 : vector<8x128xf32>
    %61 = arith.divf %59, %60 : vector<8x128xf32>
    %62 = arith.mulf %53, %30 : vector<8x128xf32>
    %63 = arith.mulf %47, %55 : vector<8x128xf32>
    %64 = arith.addf %62, %63 : vector<8x128xf32>
    %65 = math.tanh %64 : vector<8x128xf32>
    %66 = arith.mulf %61, %65 : vector<8x128xf32>
    %67 = arith.index_cast %c1_i32 : i32 to index
    %c0_16 = arith.constant 0 : index
    %c0_17 = arith.constant 0 : index
    %68 = vector.load %arg3[%67, %c0_16, %c0_17] : memref<8x8x128xf32, #tpu.memory_space<vmem>>, vector<1x8x128xf32>
    %69 = vector.shape_cast %68 : vector<1x8x128xf32> to vector<8x128xf32>
    %70 = vector.shape_cast %66 : vector<8x128xf32> to vector<1x8x128xf32>
    tpu.vector_store %arg3[%67, %c0_16, %c0_17], %70 {strides = array<i32>} : memref<8x8x128xf32, #tpu.memory_space<vmem>>, vector<1x8x128xf32>,
    %c2_i32 = arith.constant 2 : i32
    %71 = arith.index_cast %c2_i32 : i32 to index
    %c0_18 = arith.constant 0 : index
    %c0_19 = arith.constant 0 : index
    %72 = vector.load %arg1[%71, %c0_18, %c0_19] : memref<8x8x512xf32, #tpu.memory_space<vmem>>, vector<1x8x512xf32>
    %73 = vector.shape_cast %72 : vector<1x8x512xf32> to vector<8x512xf32>
    %cst_20 = arith.constant dense<0.000000e+00> : vector<8x512xf32>
    %74 = tpu.matmul %66, %0, %cst_20 {dimension_numbers = #tpu.dot_dimension_numbers<[1], [0], [0], [1], [0, 0, 1, 1], [], []>} : vector<8x128xf32>, vector<128x512xf32>, vector<8x512xf32> -> vector<8x512xf32>
    %75 = arith.addf %73, %74 : vector<8x512xf32>
    %76 = vector.extract_strided_slice %75 {offsets = [0, 0], sizes = [8, 128], strides = [1, 1]} : vector<8x512xf32> to vector<8x128xf32>
    %77 = arith.negf %76 : vector<8x128xf32>
    %78 = math.exp %77 : vector<8x128xf32>
    %cst_21 = arith.constant 1.000000e+00 : f32
    %79 = vector.broadcast %cst_21 : f32 to vector<8x128xf32>
    %80 = arith.addf %79, %78 : vector<8x128xf32>
    %81 = arith.divf %79, %80 : vector<8x128xf32>
    %82 = vector.extract_strided_slice %75 {offsets = [0, 128], sizes = [8, 128], strides = [1, 1]} : vector<8x512xf32> to vector<8x128xf32>
    %83 = arith.negf %82 : vector<8x128xf32>
    %84 = math.exp %83 : vector<8x128xf32>
    %cst_22 = arith.constant 1.000000e+00 : f32
    %85 = vector.broadcast %cst_22 : f32 to vector<8x128xf32>
    %86 = arith.addf %85, %84 : vector<8x128xf32>
    %87 = arith.divf %85, %86 : vector<8x128xf32>
    %88 = vector.extract_strided_slice %75 {offsets = [0, 256], sizes = [8, 128], strides = [1, 1]} : vector<8x512xf32> to vector<8x128xf32>
    %89 = math.tanh %88 : vector<8x128xf32>
    %90 = vector.extract_strided_slice %75 {offsets = [0, 384], sizes = [8, 128], strides = [1, 1]} : vector<8x512xf32> to vector<8x128xf32>
    %91 = arith.negf %90 : vector<8x128xf32>
    %92 = math.exp %91 : vector<8x128xf32>
    %cst_23 = arith.constant 1.000000e+00 : f32
    %93 = vector.broadcast %cst_23 : f32 to vector<8x128xf32>
    %94 = arith.addf %93, %92 : vector<8x128xf32>
    %95 = arith.divf %93, %94 : vector<8x128xf32>
    %96 = arith.mulf %87, %64 : vector<8x128xf32>
    %97 = arith.mulf %81, %89 : vector<8x128xf32>
    %98 = arith.addf %96, %97 : vector<8x128xf32>
    %99 = math.tanh %98 : vector<8x128xf32>
    %100 = arith.mulf %95, %99 : vector<8x128xf32>
    %101 = arith.index_cast %c2_i32 : i32 to index
    %c0_24 = arith.constant 0 : index
    %c0_25 = arith.constant 0 : index
    %102 = vector.load %arg3[%101, %c0_24, %c0_25] : memref<8x8x128xf32, #tpu.memory_space<vmem>>, vector<1x8x128xf32>
    %103 = vector.shape_cast %102 : vector<1x8x128xf32> to vector<8x128xf32>
    %104 = vector.shape_cast %100 : vector<8x128xf32> to vector<1x8x128xf32>
    tpu.vector_store %arg3[%101, %c0_24, %c0_25], %104 {strides = array<i32>} : memref<8x8x128xf32, #tpu.memory_space<vmem>>, vector<1x8x128xf32>,
    %c3_i32 = arith.constant 3 : i32
    %105 = arith.index_cast %c3_i32 : i32 to index
    %c0_26 = arith.constant 0 : index
    %c0_27 = arith.constant 0 : index
    %106 = vector.load %arg1[%105, %c0_26, %c0_27] : memref<8x8x512xf32, #tpu.memory_space<vmem>>, vector<1x8x512xf32>
    %107 = vector.shape_cast %106 : vector<1x8x512xf32> to vector<8x512xf32>
    %cst_28 = arith.constant dense<0.000000e+00> : vector<8x512xf32>
    %108 = tpu.matmul %100, %0, %cst_28 {dimension_numbers = #tpu.dot_dimension_numbers<[1], [0], [0], [1], [0, 0, 1, 1], [], []>} : vector<8x128xf32>, vector<128x512xf32>, vector<8x512xf32> -> vector<8x512xf32>
    %109 = arith.addf %107, %108 : vector<8x512xf32>
    %110 = vector.extract_strided_slice %109 {offsets = [0, 0], sizes = [8, 128], strides = [1, 1]} : vector<8x512xf32> to vector<8x128xf32>
    %111 = arith.negf %110 : vector<8x128xf32>
    %112 = math.exp %111 : vector<8x128xf32>
    %cst_29 = arith.constant 1.000000e+00 : f32
    %113 = vector.broadcast %cst_29 : f32 to vector<8x128xf32>
    %114 = arith.addf %113, %112 : vector<8x128xf32>
    %115 = arith.divf %113, %114 : vector<8x128xf32>
    %116 = vector.extract_strided_slice %109 {offsets = [0, 128], sizes = [8, 128], strides = [1, 1]} : vector<8x512xf32> to vector<8x128xf32>
    %117 = arith.negf %116 : vector<8x128xf32>
    %118 = math.exp %117 : vector<8x128xf32>
    %cst_30 = arith.constant 1.000000e+00 : f32
    %119 = vector.broadcast %cst_30 : f32 to vector<8x128xf32>
    %120 = arith.addf %119, %118 : vector<8x128xf32>
    %121 = arith.divf %119, %120 : vector<8x128xf32>
    %122 = vector.extract_strided_slice %109 {offsets = [0, 256], sizes = [8, 128], strides = [1, 1]} : vector<8x512xf32> to vector<8x128xf32>
    %123 = math.tanh %122 : vector<8x128xf32>
    %124 = vector.extract_strided_slice %109 {offsets = [0, 384], sizes = [8, 128], strides = [1, 1]} : vector<8x512xf32> to vector<8x128xf32>
    %125 = arith.negf %124 : vector<8x128xf32>
    %126 = math.exp %125 : vector<8x128xf32>
    %cst_31 = arith.constant 1.000000e+00 : f32
    %127 = vector.broadcast %cst_31 : f32 to vector<8x128xf32>
    %128 = arith.addf %127, %126 : vector<8x128xf32>
    %129 = arith.divf %127, %128 : vector<8x128xf32>
    %130 = arith.mulf %121, %98 : vector<8x128xf32>
    %131 = arith.mulf %115, %123 : vector<8x128xf32>
    %132 = arith.addf %130, %131 : vector<8x128xf32>
    %133 = math.tanh %132 : vector<8x128xf32>
    %134 = arith.mulf %129, %133 : vector<8x128xf32>
    %135 = arith.index_cast %c3_i32 : i32 to index
    %c0_32 = arith.constant 0 : index
    %c0_33 = arith.constant 0 : index
    %136 = vector.load %arg3[%135, %c0_32, %c0_33] : memref<8x8x128xf32, #tpu.memory_space<vmem>>, vector<1x8x128xf32>
    %137 = vector.shape_cast %136 : vector<1x8x128xf32> to vector<8x128xf32>
    %138 = vector.shape_cast %134 : vector<8x128xf32> to vector<1x8x128xf32>
    tpu.vector_store %arg3[%135, %c0_32, %c0_33], %138 {strides = array<i32>} : memref<8x8x128xf32, #tpu.memory_space<vmem>>, vector<1x8x128xf32>,
    %c4_i32 = arith.constant 4 : i32
    %139 = arith.index_cast %c4_i32 : i32 to index
    %c0_34 = arith.constant 0 : index
    %c0_35 = arith.constant 0 : index
    %140 = vector.load %arg1[%139, %c0_34, %c0_35] : memref<8x8x512xf32, #tpu.memory_space<vmem>>, vector<1x8x512xf32>
    %141 = vector.shape_cast %140 : vector<1x8x512xf32> to vector<8x512xf32>
    %cst_36 = arith.constant dense<0.000000e+00> : vector<8x512xf32>
    %142 = tpu.matmul %134, %0, %cst_36 {dimension_numbers = #tpu.dot_dimension_numbers<[1], [0], [0], [1], [0, 0, 1, 1], [], []>} : vector<8x128xf32>, vector<128x512xf32>, vector<8x512xf32> -> vector<8x512xf32>
    %143 = arith.addf %141, %142 : vector<8x512xf32>
    %144 = vector.extract_strided_slice %143 {offsets = [0, 0], sizes = [8, 128], strides = [1, 1]} : vector<8x512xf32> to vector<8x128xf32>
    %145 = arith.negf %144 : vector<8x128xf32>
    %146 = math.exp %145 : vector<8x128xf32>
    %cst_37 = arith.constant 1.000000e+00 : f32
    %147 = vector.broadcast %cst_37 : f32 to vector<8x128xf32>
    %148 = arith.addf %147, %146 : vector<8x128xf32>
    %149 = arith.divf %147, %148 : vector<8x128xf32>
    %150 = vector.extract_strided_slice %143 {offsets = [0, 128], sizes = [8, 128], strides = [1, 1]} : vector<8x512xf32> to vector<8x128xf32>
    %151 = arith.negf %150 : vector<8x128xf32>
    %152 = math.exp %151 : vector<8x128xf32>
    %cst_38 = arith.constant 1.000000e+00 : f32
    %153 = vector.broadcast %cst_38 : f32 to vector<8x128xf32>
    %154 = arith.addf %153, %152 : vector<8x128xf32>
    %155 = arith.divf %153, %154 : vector<8x128xf32>
    %156 = vector.extract_strided_slice %143 {offsets = [0, 256], sizes = [8, 128], strides = [1, 1]} : vector<8x512xf32> to vector<8x128xf32>
    %157 = math.tanh %156 : vector<8x128xf32>
    %158 = vector.extract_strided_slice %143 {offsets = [0, 384], sizes = [8, 128], strides = [1, 1]} : vector<8x512xf32> to vector<8x128xf32>
    %159 = arith.negf %158 : vector<8x128xf32>
    %160 = math.exp %159 : vector<8x128xf32>
    %cst_39 = arith.constant 1.000000e+00 : f32
    %161 = vector.broadcast %cst_39 : f32 to vector<8x128xf32>
    %162 = arith.addf %161, %160 : vector<8x128xf32>
    %163 = arith.divf %161, %162 : vector<8x128xf32>
    %164 = arith.mulf %155, %132 : vector<8x128xf32>
    %165 = arith.mulf %149, %157 : vector<8x128xf32>
    %166 = arith.addf %164, %165 : vector<8x128xf32>
    %167 = math.tanh %166 : vector<8x128xf32>
    %168 = arith.mulf %163, %167 : vector<8x128xf32>
    %169 = arith.index_cast %c4_i32 : i32 to index
    %c0_40 = arith.constant 0 : index
    %c0_41 = arith.constant 0 : index
    %170 = vector.load %arg3[%169, %c0_40, %c0_41] : memref<8x8x128xf32, #tpu.memory_space<vmem>>, vector<1x8x128xf32>
    %171 = vector.shape_cast %170 : vector<1x8x128xf32> to vector<8x128xf32>
    %172 = vector.shape_cast %168 : vector<8x128xf32> to vector<1x8x128xf32>
    tpu.vector_store %arg3[%169, %c0_40, %c0_41], %172 {strides = array<i32>} : memref<8x8x128xf32, #tpu.memory_space<vmem>>, vector<1x8x128xf32>,
    %c5_i32 = arith.constant 5 : i32
    %173 = arith.index_cast %c5_i32 : i32 to index
    %c0_42 = arith.constant 0 : index
    %c0_43 = arith.constant 0 : index
    %174 = vector.load %arg1[%173, %c0_42, %c0_43] : memref<8x8x512xf32, #tpu.memory_space<vmem>>, vector<1x8x512xf32>
    %175 = vector.shape_cast %174 : vector<1x8x512xf32> to vector<8x512xf32>
    %cst_44 = arith.constant dense<0.000000e+00> : vector<8x512xf32>
    %176 = tpu.matmul %168, %0, %cst_44 {dimension_numbers = #tpu.dot_dimension_numbers<[1], [0], [0], [1], [0, 0, 1, 1], [], []>} : vector<8x128xf32>, vector<128x512xf32>, vector<8x512xf32> -> vector<8x512xf32>
    %177 = arith.addf %175, %176 : vector<8x512xf32>
    %178 = vector.extract_strided_slice %177 {offsets = [0, 0], sizes = [8, 128], strides = [1, 1]} : vector<8x512xf32> to vector<8x128xf32>
    %179 = arith.negf %178 : vector<8x128xf32>
    %180 = math.exp %179 : vector<8x128xf32>
    %cst_45 = arith.constant 1.000000e+00 : f32
    %181 = vector.broadcast %cst_45 : f32 to vector<8x128xf32>
    %182 = arith.addf %181, %180 : vector<8x128xf32>
    %183 = arith.divf %181, %182 : vector<8x128xf32>
    %184 = vector.extract_strided_slice %177 {offsets = [0, 128], sizes = [8, 128], strides = [1, 1]} : vector<8x512xf32> to vector<8x128xf32>
    %185 = arith.negf %184 : vector<8x128xf32>
    %186 = math.exp %185 : vector<8x128xf32>
    %cst_46 = arith.constant 1.000000e+00 : f32
    %187 = vector.broadcast %cst_46 : f32 to vector<8x128xf32>
    %188 = arith.addf %187, %186 : vector<8x128xf32>
    %189 = arith.divf %187, %188 : vector<8x128xf32>
    %190 = vector.extract_strided_slice %177 {offsets = [0, 256], sizes = [8, 128], strides = [1, 1]} : vector<8x512xf32> to vector<8x128xf32>
    %191 = math.tanh %190 : vector<8x128xf32>
    %192 = vector.extract_strided_slice %177 {offsets = [0, 384], sizes = [8, 128], strides = [1, 1]} : vector<8x512xf32> to vector<8x128xf32>
    %193 = arith.negf %192 : vector<8x128xf32>
    %194 = math.exp %193 : vector<8x128xf32>
    %cst_47 = arith.constant 1.000000e+00 : f32
    %195 = vector.broadcast %cst_47 : f32 to vector<8x128xf32>
    %196 = arith.addf %195, %194 : vector<8x128xf32>
    %197 = arith.divf %195, %196 : vector<8x128xf32>
    %198 = arith.mulf %189, %166 : vector<8x128xf32>
    %199 = arith.mulf %183, %191 : vector<8x128xf32>
    %200 = arith.addf %198, %199 : vector<8x128xf32>
    %201 = math.tanh %200 : vector<8x128xf32>
    %202 = arith.mulf %197, %201 : vector<8x128xf32>
    %203 = arith.index_cast %c5_i32 : i32 to index
    %c0_48 = arith.constant 0 : index
    %c0_49 = arith.constant 0 : index
    %204 = vector.load %arg3[%203, %c0_48, %c0_49] : memref<8x8x128xf32, #tpu.memory_space<vmem>>, vector<1x8x128xf32>
    %205 = vector.shape_cast %204 : vector<1x8x128xf32> to vector<8x128xf32>
    %206 = vector.shape_cast %202 : vector<8x128xf32> to vector<1x8x128xf32>
    tpu.vector_store %arg3[%203, %c0_48, %c0_49], %206 {strides = array<i32>} : memref<8x8x128xf32, #tpu.memory_space<vmem>>, vector<1x8x128xf32>,
    %c6_i32 = arith.constant 6 : i32
    %207 = arith.index_cast %c6_i32 : i32 to index
    %c0_50 = arith.constant 0 : index
    %c0_51 = arith.constant 0 : index
    %208 = vector.load %arg1[%207, %c0_50, %c0_51] : memref<8x8x512xf32, #tpu.memory_space<vmem>>, vector<1x8x512xf32>
    %209 = vector.shape_cast %208 : vector<1x8x512xf32> to vector<8x512xf32>
    %cst_52 = arith.constant dense<0.000000e+00> : vector<8x512xf32>
    %210 = tpu.matmul %202, %0, %cst_52 {dimension_numbers = #tpu.dot_dimension_numbers<[1], [0], [0], [1], [0, 0, 1, 1], [], []>} : vector<8x128xf32>, vector<128x512xf32>, vector<8x512xf32> -> vector<8x512xf32>
    %211 = arith.addf %209, %210 : vector<8x512xf32>
    %212 = vector.extract_strided_slice %211 {offsets = [0, 0], sizes = [8, 128], strides = [1, 1]} : vector<8x512xf32> to vector<8x128xf32>
    %213 = arith.negf %212 : vector<8x128xf32>
    %214 = math.exp %213 : vector<8x128xf32>
    %cst_53 = arith.constant 1.000000e+00 : f32
    %215 = vector.broadcast %cst_53 : f32 to vector<8x128xf32>
    %216 = arith.addf %215, %214 : vector<8x128xf32>
    %217 = arith.divf %215, %216 : vector<8x128xf32>
    %218 = vector.extract_strided_slice %211 {offsets = [0, 128], sizes = [8, 128], strides = [1, 1]} : vector<8x512xf32> to vector<8x128xf32>
    %219 = arith.negf %218 : vector<8x128xf32>
    %220 = math.exp %219 : vector<8x128xf32>
    %cst_54 = arith.constant 1.000000e+00 : f32
    %221 = vector.broadcast %cst_54 : f32 to vector<8x128xf32>
    %222 = arith.addf %221, %220 : vector<8x128xf32>
    %223 = arith.divf %221, %222 : vector<8x128xf32>
    %224 = vector.extract_strided_slice %211 {offsets = [0, 256], sizes = [8, 128], strides = [1, 1]} : vector<8x512xf32> to vector<8x128xf32>
    %225 = math.tanh %224 : vector<8x128xf32>
    %226 = vector.extract_strided_slice %211 {offsets = [0, 384], sizes = [8, 128], strides = [1, 1]} : vector<8x512xf32> to vector<8x128xf32>
    %227 = arith.negf %226 : vector<8x128xf32>
    %228 = math.exp %227 : vector<8x128xf32>
    %cst_55 = arith.constant 1.000000e+00 : f32
    %229 = vector.broadcast %cst_55 : f32 to vector<8x128xf32>
    %230 = arith.addf %229, %228 : vector<8x128xf32>
    %231 = arith.divf %229, %230 : vector<8x128xf32>
    %232 = arith.mulf %223, %200 : vector<8x128xf32>
    %233 = arith.mulf %217, %225 : vector<8x128xf32>
    %234 = arith.addf %232, %233 : vector<8x128xf32>
    %235 = math.tanh %234 : vector<8x128xf32>
    %236 = arith.mulf %231, %235 : vector<8x128xf32>
    %237 = arith.index_cast %c6_i32 : i32 to index
    %c0_56 = arith.constant 0 : index
    %c0_57 = arith.constant 0 : index
    %238 = vector.load %arg3[%237, %c0_56, %c0_57] : memref<8x8x128xf32, #tpu.memory_space<vmem>>, vector<1x8x128xf32>
    %239 = vector.shape_cast %238 : vector<1x8x128xf32> to vector<8x128xf32>
    %240 = vector.shape_cast %236 : vector<8x128xf32> to vector<1x8x128xf32>
    tpu.vector_store %arg3[%237, %c0_56, %c0_57], %240 {strides = array<i32>} : memref<8x8x128xf32, #tpu.memory_space<vmem>>, vector<1x8x128xf32>,
    %c7_i32 = arith.constant 7 : i32
    %241 = arith.index_cast %c7_i32 : i32 to index
    %c0_58 = arith.constant 0 : index
    %c0_59 = arith.constant 0 : index
    %242 = vector.load %arg1[%241, %c0_58, %c0_59] : memref<8x8x512xf32, #tpu.memory_space<vmem>>, vector<1x8x512xf32>
    %243 = vector.shape_cast %242 : vector<1x8x512xf32> to vector<8x512xf32>
    %cst_60 = arith.constant dense<0.000000e+00> : vector<8x512xf32>
    %244 = tpu.matmul %236, %0, %cst_60 {dimension_numbers = #tpu.dot_dimension_numbers<[1], [0], [0], [1], [0, 0, 1, 1], [], []>} : vector<8x128xf32>, vector<128x512xf32>, vector<8x512xf32> -> vector<8x512xf32>
    %245 = arith.addf %243, %244 : vector<8x512xf32>
    %246 = vector.extract_strided_slice %245 {offsets = [0, 0], sizes = [8, 128], strides = [1, 1]} : vector<8x512xf32> to vector<8x128xf32>
    %247 = arith.negf %246 : vector<8x128xf32>
    %248 = math.exp %247 : vector<8x128xf32>
    %cst_61 = arith.constant 1.000000e+00 : f32
    %249 = vector.broadcast %cst_61 : f32 to vector<8x128xf32>
    %250 = arith.addf %249, %248 : vector<8x128xf32>
    %251 = arith.divf %249, %250 : vector<8x128xf32>
    %252 = vector.extract_strided_slice %245 {offsets = [0, 128], sizes = [8, 128], strides = [1, 1]} : vector<8x512xf32> to vector<8x128xf32>
    %253 = arith.negf %252 : vector<8x128xf32>
    %254 = math.exp %253 : vector<8x128xf32>
    %cst_62 = arith.constant 1.000000e+00 : f32
    %255 = vector.broadcast %cst_62 : f32 to vector<8x128xf32>
    %256 = arith.addf %255, %254 : vector<8x128xf32>
    %257 = arith.divf %255, %256 : vector<8x128xf32>
    %258 = vector.extract_strided_slice %245 {offsets = [0, 256], sizes = [8, 128], strides = [1, 1]} : vector<8x512xf32> to vector<8x128xf32>
    %259 = math.tanh %258 : vector<8x128xf32>
    %260 = vector.extract_strided_slice %245 {offsets = [0, 384], sizes = [8, 128], strides = [1, 1]} : vector<8x512xf32> to vector<8x128xf32>
    %261 = arith.negf %260 : vector<8x128xf32>
    %262 = math.exp %261 : vector<8x128xf32>
    %cst_63 = arith.constant 1.000000e+00 : f32
    %263 = vector.broadcast %cst_63 : f32 to vector<8x128xf32>
    %264 = arith.addf %263, %262 : vector<8x128xf32>
    %265 = arith.divf %263, %264 : vector<8x128xf32>
    %266 = arith.mulf %257, %234 : vector<8x128xf32>
    %267 = arith.mulf %251, %259 : vector<8x128xf32>
    %268 = arith.addf %266, %267 : vector<8x128xf32>
    %269 = math.tanh %268 : vector<8x128xf32>
    %270 = arith.mulf %265, %269 : vector<8x128xf32>
    %271 = arith.index_cast %c7_i32 : i32 to index
    %c0_64 = arith.constant 0 : index
    %c0_65 = arith.constant 0 : index
    %272 = vector.load %arg3[%271, %c0_64, %c0_65] : memref<8x8x128xf32, #tpu.memory_space<vmem>>, vector<1x8x128xf32>
    %273 = vector.shape_cast %272 : vector<1x8x128xf32> to vector<8x128xf32>
    %274 = vector.shape_cast %270 : vector<8x128xf32> to vector<1x8x128xf32>
    tpu.vector_store %arg3[%271, %c0_64, %c0_65], %274 {strides = array<i32>} : memref<8x8x128xf32, #tpu.memory_space<vmem>>, vector<1x8x128xf32>,
    %c8_i32 = arith.constant 8 : i32
    return
  }
  func.func @transform_0(%arg0: i32) -> (i32, i32, i32) {
    %c0_i32 = arith.constant 0 : i32
    %c0_i32_0 = arith.constant 0 : i32
    %c0_i32_1 = arith.constant 0 : i32
    %c0_i32_2 = arith.constant 0 : i32
    return %c0_i32, %c0_i32_0, %c0_i32_1 : i32, i32, i32
  }
  func.func @transform_1(%arg0: i32) -> (i32, i32) {
    %c0_i32 = arith.constant 0 : i32
    %c0_i32_0 = arith.constant 0 : i32
    %c0_i32_1 = arith.constant 0 : i32
    return %c0_i32, %c0_i32_0 : i32, i32
  }
  func.func @transform_2(%arg0: i32) -> (i32, i32, i32) {
    %c0_i32 = arith.constant 0 : i32
    %c0_i32_0 = arith.constant 0 : i32
    %c0_i32_1 = arith.constant 0 : i32
    %c0_i32_2 = arith.constant 0 : i32
    return %c0_i32, %c0_i32_0, %c0_i32_1 : i32, i32, i32
  }
}

</mosaic_0001>

<llo_original>
// kernel: tpu_custom_call.1
$region0: #{tpu_custom_call.1}
  #allocation0 [shape = 'u32[]', space=smem, size = 0x4, offset = 0x4, fixed_abs, tag = 'smem constant byte address 0x4 - core index']
  #allocation1 [shape = 'u32[144,128]{1,0:T(1,128)}', space=vmem, size = 0x12000, scoped, tag = 'internal scratch']
  %s0 = inlined_call_operand.hbm [shape: f32[8,8,512], index: 0, kind: input, shape index: {}]
  %s1 = inlined_call_operand.hbm [shape: f32[128,512], index: 1, kind: input, shape index: {}]
  %s2 = inlined_call_operand.hbm [shape: f32[8,8,128], index: 2, kind: output, shape index: {}]
  %s3 = sld [smem:[#allocation0]]
  $region26: #{tpu_custom_call.1} parent=0
    _
  %s5 = ssub.s32 1, %s3
  %s6 = scalar_select 0, %s5, %s3
  $region1: #{tpu_custom_call.1} parent=0
    #allocation2 [shape = 'u8[131072]{0}', space=vmem, size = 0x20000, scoped, tag = 'input window, operand 0, single buffered']
    #allocation3 [shape = 's32[1]{0}', space=sflag, size = 0x4, scoped, tag = 'scoped memory for tpu_custom_call.1']
    #allocation4 [shape = 's32[1]{0}', space=sflag, size = 0x4, scoped, tag = 'scoped memory for tpu_custom_call.1']
    #allocation5 [shape = 'u8[262144]{0}', space=vmem, size = 0x40000, scoped, tag = 'input window, operand 1, single buffered']
    #allocation6 [shape = 's32[1]{0}', space=sflag, size = 0x4, scoped, tag = 'scoped memory for tpu_custom_call.1']
    #allocation7 [shape = 'u8[32768]{0}', space=vmem, size = 0x8000, scoped, tag = 'output window, operand 0, single buffered']
    %7 = vsyncpa [#allocation3], 0
    %8 = vsyncpa [#allocation6], 0
    %9 = vsyncpa [#allocation4], 0
    // Predicated region
    $region2: #{tpu_custom_call.1} parent=1 // pred_check
      _
    $region3: #{tpu_custom_call.1} parent=1 // pred_check_branch
      %11 = sbr.rel (0) target = $region5
    $region4: #{tpu_custom_call.1} parent=1 // pred_region
      %s13 = ssub.s32 4096, 4096
      %14 = vsyncadd [#allocation3], %s13
      %s15 = sshll.u32 [#allocation2], 4
      %s16 = int_to_ptr.vmem [resolvable:$true] %s15
      %21 = dma.hbm_to_vmem [thread:$0]  %s0, 4096, %s16, [#allocation3], 512, 512, 32
    $region5: #{tpu_custom_call.1} parent=1 // pred_fallthru
      _
    // Predicated region
    $region6: #{tpu_custom_call.1} parent=1 // pred_check
      _
    $region7: #{tpu_custom_call.1} parent=1 // pred_check_branch
      %23 = sbr.rel (0) target = $region9
    $region8: #{tpu_custom_call.1} parent=1 // pred_region
      %s25 = ssub.s32 8192, 8192
      %26 = vsyncadd [#allocation6], %s25
      %s27 = sshll.u32 [#allocation5], 4
      %s28 = int_to_ptr.vmem [resolvable:$true] %s27
      %33 = dma.hbm_to_vmem [thread:$0]  %s1, 8192, %s28, [#allocation6], 512, 512, 32
    $region9: #{tpu_custom_call.1} parent=1 // pred_fallthru
      _
    // Predicated region
    $region10: #{tpu_custom_call.1} parent=1 // pred_check
      _
    $region11: #{tpu_custom_call.1} parent=1 // pred_check_branch
      %35 = sbr.rel (0) target = $region13
    $region12: #{tpu_custom_call.1} parent=1 // pred_region
      %36 = dma.done [#allocation3], 4096
    $region13: #{tpu_custom_call.1} parent=1 // pred_fallthru
      _
    // Predicated region
    $region14: #{tpu_custom_call.1} parent=1 // pred_check
      _
    $region15: #{tpu_custom_call.1} parent=1 // pred_check_branch
      %38 = sbr.rel (0) target = $region17
    $region16: #{tpu_custom_call.1} parent=1 // pred_region
      %39 = dma.done [#allocation6], 8192
    $region17: #{tpu_custom_call.1} parent=1 // pred_fallthru
      _
    %v40 = vld [vmem:[#allocation5] sm:$0xff]
    %v41 = vld [vmem:[#allocation5 + $0x8] sm:$0xff]
    %v42 = vld [vmem:[#allocation5 + $0x10] sm:$0xff]
    %v43 = vld [vmem:[#allocation5 + $0x18] sm:$0xff]
    %v44 = vld [vmem:[#allocation5 + $0x20] sm:$0xff]
    %v45 = vld [vmem:[#allocation5 + $0x28] sm:$0xff]
    %v46 = vld [vmem:[#allocation5 + $0x30] sm:$0xff]
    %v47 = vld [vmem:[#allocation5 + $0x38] sm:$0xff]
    %v48 = vld [vmem:[#allocation5 + $0x40] sm:$0xff]
    %v49 = vld [vmem:[#allocation5 + $0x48] sm:$0xff]
    %v50 = vld [vmem:[#allocation5 + $0x50] sm:$0xff]
    %v51 = vld [vmem:[#allocation5 + $0x58] sm:$0xff]
    %v52 = vld [vmem:[#allocation5 + $0x60] sm:$0xff]
    %v53 = vld [vmem:[#allocation5 + $0x68] sm:$0xff]
    %v54 = vld [vmem:[#allocation5 + $0x70] sm:$0xff]
    %v55 = vld [vmem:[#allocation5 + $0x78] sm:$0xff]
    %v56 = vld [vmem:[#allocation5 + $0x80] sm:$0xff]
    %v57 = vld [vmem:[#allocation5 + $0x88] sm:$0xff]
    %v58 = vld [vmem:[#allocation5 + $0x90] sm:$0xff]
    %v59 = vld [vmem:[#allocation5 + $0x98] sm:$0xff]
    %v60 = vld [vmem:[#allocation5 + $0xa0] sm:$0xff]
    %v61 = vld [vmem:[#allocation5 + $0xa8] sm:$0xff]
    %v62 = vld [vmem:[#allocation5 + $0xb0] sm:$0xff]
    %v63 = vld [vmem:[#allocation5 + $0xb8] sm:$0xff]
    %v64 = vld [vmem:[#allocation5 + $0xc0] sm:$0xff]
    %v65 = vld [vmem:[#allocation5 + $0xc8] sm:$0xff]
    %v66 = vld [vmem:[#allocation5 + $0xd0] sm:$0xff]
    %v67 = vld [vmem:[#allocation5 + $0xd8] sm:$0xff]
    %v68 = vld [vmem:[#allocation5 + $0xe0] sm:$0xff]
    %v69 = vld [vmem:[#allocation5 + $0xe8] sm:$0xff]
    %v70 = vld [vmem:[#allocation5 + $0xf0] sm:$0xff]
    %v71 = vld [vmem:[#allocation5 + $0xf8] sm:$0xff]
    %v72 = vld [vmem:[#allocation5 + $0x100] sm:$0xff]
    %v73 = vld [vmem:[#allocation5 + $0x108] sm:$0xff]
    %v74 = vld [vmem:[#allocation5 + $0x110] sm:$0xff]
    %v75 = vld [vmem:[#allocation5 + $0x118] sm:$0xff]
    %v76 = vld [vmem:[#allocation5 + $0x120] sm:$0xff]
    %v77 = vld [vmem:[#allocation5 + $0x128] sm:$0xff]
    %v78 = vld [vmem:[#allocation5 + $0x130] sm:$0xff]
    %v79 = vld [vmem:[#allocation5 + $0x138] sm:$0xff]
    %v80 = vld [vmem:[#allocation5 + $0x140] sm:$0xff]
    %v81 = vld [vmem:[#allocation5 + $0x148] sm:$0xff]
    %v82 = vld [vmem:[#allocation5 + $0x150] sm:$0xff]
    %v83 = vld [vmem:[#allocation5 + $0x158] sm:$0xff]
    %v84 = vld [vmem:[#allocation5 + $0x160] sm:$0xff]
    %v85 = vld [vmem:[#allocation5 + $0x168] sm:$0xff]
    %v86 = vld [vmem:[#allocation5 + $0x170] sm:$0xff]
    %v87 = vld [vmem:[#allocation5 + $0x178] sm:$0xff]
    %v88 = vld [vmem:[#allocation5 + $0x180] sm:$0xff]
    %v89 = vld [vmem:[#allocation5 + $0x188] sm:$0xff]
    %v90 = vld [vmem:[#allocation5 + $0x190] sm:$0xff]
    %v91 = vld [vmem:[#allocation5 + $0x198] sm:$0xff]
    %v92 = vld [vmem:[#allocation5 + $0x1a0] sm:$0xff]
    %v93 = vld [vmem:[#allocation5 + $0x1a8] sm:$0xff]
    %v94 = vld [vmem:[#allocation5 + $0x1b0] sm:$0xff]
    %v95 = vld [vmem:[#allocation5 + $0x1b8] sm:$0xff]
    %v96 = vld [vmem:[#allocation5 + $0x1c0] sm:$0xff]
    %v97 = vld [vmem:[#allocation5 + $0x1c8] sm:$0xff]
    %v98 = vld [vmem:[#allocation5 + $0x1d0] sm:$0xff]
    %v99 = vld [vmem:[#allocation5 + $0x1d8] sm:$0xff]
    %v100 = vld [vmem:[#allocation5 + $0x1e0] sm:$0xff]
    %v101 = vld [vmem:[#allocation5 + $0x1e8] sm:$0xff]
    %v102 = vld [vmem:[#allocation5 + $0x1f0] sm:$0xff]
    %v103 = vld [vmem:[#allocation5 + $0x1f8] sm:$0xff]
    %v104 = vld [vmem:[#allocation2] sm:$0xff]
    %v105 = vld [vmem:[#allocation2 + $0x8] sm:$0xff]
    %v106 = vld [vmem:[#allocation2 + $0x10] sm:$0xff]
    %v107 = vld [vmem:[#allocation2 + $0x18] sm:$0xff]
    %108 = vmatprep.subr.mxu0 %v41
    %109 = vmatpush1.msra.mxu0 %v40
    %110 = vmatprep.subr.mxu0 %v45
    %111 = vmatpush1.msra.mxu0 %v44
    %112 = vmatprep.subr.mxu0 %v49
    %113 = vmatpush1.msra.mxu0 %v48
    %114 = vmatprep.subr.mxu0 %v53
    %115 = vmatpush1.msra.mxu0 %v52
    %116 = vmatprep.subr.mxu0 %v57
    %117 = vmatpush1.msra.mxu0 %v56
    %118 = vmatprep.subr.mxu0 %v61
    %119 = vmatpush1.msra.mxu0 %v60
    %120 = vmatprep.subr.mxu0 %v65
    %121 = vmatpush1.msra.mxu0 %v64
    %122 = vmatprep.subr.mxu0 %v69
    %123 = vmatpush1.msra.mxu0 %v68
    %124 = vmatprep.subr.mxu0 %v73
    %125 = vmatpush1.msra.mxu0 %v72
    %126 = vmatprep.subr.mxu0 %v77
    %127 = vmatpush1.msra.mxu0 %v76
    %128 = vmatprep.subr.mxu0 %v81
    %129 = vmatpush1.msra.mxu0 %v80
    %130 = vmatprep.subr.mxu0 %v85
    %131 = vmatpush1.msra.mxu0 %v84
    %132 = vmatprep.subr.mxu0 %v89
    %133 = vmatpush1.msra.mxu0 %v88
    %134 = vmatprep.subr.mxu0 %v93
    %135 = vmatpush1.msra.mxu0 %v92
    %136 = vmatprep.subr.mxu0 %v97
    %137 = vmatpush1.msra.mxu0 %v96
    %138 = vmatprep.subr.mxu0 %v101
    %139 = vmatpush1.msra.mxu0 %v100
    %140 = vmatprep.subr.mxu0 0.0
    %141 = vmatpush1.msra.mxu0 0.0
    %142 = vmatprep.subr.mxu0 0.0
    %143 = vmatpush1.msra.mxu0 0.0
    %144 = vmatprep.subr.mxu0 0.0
    %145 = vmatpush1.msra.mxu0 0.0
    %146 = vmatprep.subr.mxu0 0.0
    %147 = vmatpush1.msra.mxu0 0.0
    %148 = vmatprep.subr.mxu0 0.0
    %149 = vmatpush1.msra.mxu0 0.0
    %150 = vmatprep.subr.mxu0 0.0
    %151 = vmatpush1.msra.mxu0 0.0
    %152 = vmatprep.subr.mxu0 0.0
    %153 = vmatpush1.msra.mxu0 0.0
    %154 = vmatprep.subr.mxu0 0.0
    %155 = vmatpush1.msra.mxu0 0.0
    %156 = vmatprep.subr.mxu0 0.0
    %157 = vmatpush1.msra.mxu0 0.0
    %158 = vmatprep.subr.mxu0 0.0
    %159 = vmatpush1.msra.mxu0 0.0
    %160 = vmatprep.subr.mxu0 0.0
    %161 = vmatpush1.msra.mxu0 0.0
    %162 = vmatprep.subr.mxu0 0.0
    %163 = vmatpush1.msra.mxu0 0.0
    %164 = vmatprep.subr.mxu0 0.0
    %165 = vmatpush1.msra.mxu0 0.0
    %166 = vmatprep.subr.mxu0 0.0
    %167 = vmatpush1.msra.mxu0 0.0
    %168 = vmatprep.subr.mxu0 0.0
    %169 = vmatpush1.msra.mxu0 0.0
    %170 = vmatprep.subr.mxu0 0.0
    %171 = vmatpush1.msra.mxu0 0.0
    %172 = vmatprep.mubr.f32.mxu0 0.0
    %173 = vmatmul.mubr.f32.gmra.mrb[0].mxu0 0.0
    %v174 = vpop.f32.mrb[0].mxu0
    %v175 = vadd.f32 0.0, %v174
    %v176 = vpop.f32.mrb[0].mxu0
    %v177 = vadd.f32 0.0, %v176
    %178 = vdwg.mxu0
    %179 = vmatprep.subr.mxu0 %v43
    %180 = vmatpush1.msra.mxu0 %v42
    %181 = vmatprep.subr.mxu0 %v47
    %182 = vmatpush1.msra.mxu0 %v46
    %183 = vmatprep.subr.mxu0 %v51
    %184 = vmatpush1.msra.mxu0 %v50
    %185 = vmatprep.subr.mxu0 %v55
    %186 = vmatpush1.msra.mxu0 %v54
    %187 = vmatprep.subr.mxu0 %v59
    %188 = vmatpush1.msra.mxu0 %v58
    %189 = vmatprep.subr.mxu0 %v63
    %190 = vmatpush1.msra.mxu0 %v62
    %191 = vmatprep.subr.mxu0 %v67
    %192 = vmatpush1.msra.mxu0 %v66
    %193 = vmatprep.subr.mxu0 %v71
    %194 = vmatpush1.msra.mxu0 %v70
    %195 = vmatprep.subr.mxu0 %v75
    %196 = vmatpush1.msra.mxu0 %v74
    %197 = vmatprep.subr.mxu0 %v79
    %198 = vmatpush1.msra.mxu0 %v78
    %199 = vmatprep.subr.mxu0 %v83
    %200 = vmatpush1.msra.mxu0 %v82
    %201 = vmatprep.subr.mxu0 %v87
    %202 = vmatpush1.msra.mxu0 %v86
    %203 = vmatprep.subr.mxu0 %v91
    %204 = vmatpush1.msra.mxu0 %v90
    %205 = vmatprep.subr.mxu0 %v95
    %206 = vmatpush1.msra.mxu0 %v94
    %207 = vmatprep.subr.mxu0 %v99
    %208 = vmatpush1.msra.mxu0 %v98
    %209 = vmatprep.subr.mxu0 %v103
    %210 = vmatpush1.msra.mxu0 %v102
    %211 = vmatprep.subr.mxu0 0.0
    %212 = vmatpush1.msra.mxu0 0.0
    %213 = vmatprep.subr.mxu0 0.0
    %214 = vmatpush1.msra.mxu0 0.0
    %215 = vmatprep.subr.mxu0 0.0
    %216 = vmatpush1.msra.mxu0 0.0
    %217 = vmatprep.subr.mxu0 0.0
    %218 = vmatpush1.msra.mxu0 0.0
    %219 = vmatprep.subr.mxu0 0.0
    %220 = vmatpush1.msra.mxu0 0.0
    %221 = vmatprep.subr.mxu0 0.0
    %222 = vmatpush1.msra.mxu0 0.0
    %223 = vmatprep.subr.mxu0 0.0
    %224 = vmatpush1.msra.mxu0 0.0
    %225 = vmatprep.subr.mxu0 0.0
    %226 = vmatpush1.msra.mxu0 0.0
    %227 = vmatprep.subr.mxu0 0.0
    %228 = vmatpush1.msra.mxu0 0.0
    %229 = vmatprep.subr.mxu0 0.0
    %230 = vmatpush1.msra.mxu0 0.0
    %231 = vmatprep.subr.mxu0 0.0
    %232 = vmatpush1.msra.mxu0 0.0
    %233 = vmatprep.subr.mxu0 0.0
    %234 = vmatpush1.msra.mxu0 0.0
    %235 = vmatprep.subr.mxu0 0.0
    %236 = vmatpush1.msra.mxu0 0.0
    %237 = vmatprep.subr.mxu0 0.0
    %238 = vmatpush1.msra.mxu0 0.0
    %239 = vmatprep.subr.mxu0 0.0
    %240 = vmatpush1.msra.mxu0 0.0
    %241 = vmatprep.subr.mxu0 0.0
    %242 = vmatpush1.msra.mxu0 0.0
    %243 = vmatprep.mubr.f32.mxu0 0.0
    %244 = vmatmul.mubr.f32.gmra.mrb[0].mxu0 0.0
    %v245 = vpop.f32.mrb[0].mxu0
    %v246 = vadd.f32 0.0, %v245
    %v247 = vpop.f32.mrb[0].mxu0
    %v248 = vadd.f32 0.0, %v247
    %249 = vdwg.mxu0
    %v250 = vadd.f32 %v104, %v175
    %v251 = vadd.f32 %v105, %v177
    %v252 = vadd.f32 %v106, %v246
    %v253 = vadd.f32 %v107, %v248
    %v254 = vxor.u32 %v250, 2147483648
    %v255 = vmul.f32 %v254, 1.442695
    %v256 = vpow.pop %v255
    %v257 = vadd.f32 %v256, 1.0
    %v258 = vrcp.pop %v257
    %v259 = vmul.f32 1.0, %v258
    %v260 = vxor.u32 %v251, 2147483648
    %v261 = vmul.f32 %v260, 1.442695
    %v262 = vpow.pop %v261
    %v263 = vadd.f32 %v262, 1.0
    %v264 = vrcp.pop %v263
    %v265 = vmul.f32 1.0, %v264
    %v266 = vtanh.pop %v252
    %v267 = vxor.u32 %v253, 2147483648
    %v268 = vmul.f32 %v267, 1.442695
    %v269 = vpow.pop %v268
    %v270 = vadd.f32 %v269, 1.0
    %v271 = vrcp.pop %v270
    %v272 = vmul.f32 1.0, %v271
    %v273 = vmul.f32 %v265, 0.0
    %v274 = vmul.f32 %v259, %v266
    %v275 = vadd.f32 %v273, %v274
    %v276 = vtanh.pop %v275
    %v277 = vmul.f32 %v272, %v276
    %278 = vst [vmem:[#allocation7] sm:$0xff] %v277
    %s279 = scalar_lea.vmem [#allocation2], 32
    %v280 = vld [vmem:[%s279] sm:$0xff]
    %v281 = vld [vmem:[%s279 + $0x8] sm:$0xff]
    %v282 = vld [vmem:[%s279 + $0x10] sm:$0xff]
    %v283 = vld [vmem:[%s279 + $0x18] sm:$0xff]
    %284 = vmatprep.subr.mxu0 %v41
    %285 = vmatpush1.msra.mxu0 %v40
    %286 = vmatprep.subr.mxu0 %v45
    %287 = vmatpush1.msra.mxu0 %v44
    %288 = vmatprep.subr.mxu0 %v49
    %289 = vmatpush1.msra.mxu0 %v48
    %290 = vmatprep.subr.mxu0 %v53
    %291 = vmatpush1.msra.mxu0 %v52
    %292 = vmatprep.subr.mxu0 %v57
    %293 = vmatpush1.msra.mxu0 %v56
    %294 = vmatprep.subr.mxu0 %v61
    %295 = vmatpush1.msra.mxu0 %v60
    %296 = vmatprep.subr.mxu0 %v65
    %297 = vmatpush1.msra.mxu0 %v64
    %298 = vmatprep.subr.mxu0 %v69
    %299 = vmatpush1.msra.mxu0 %v68
    %300 = vmatprep.subr.mxu0 %v73
    %301 = vmatpush1.msra.mxu0 %v72
    %302 = vmatprep.subr.mxu0 %v77
    %303 = vmatpush1.msra.mxu0 %v76
    %304 = vmatprep.subr.mxu0 %v81
    %305 = vmatpush1.msra.mxu0 %v80
    %306 = vmatprep.subr.mxu0 %v85
    %307 = vmatpush1.msra.mxu0 %v84
    %308 = vmatprep.subr.mxu0 %v89
    %309 = vmatpush1.msra.mxu0 %v88
    %310 = vmatprep.subr.mxu0 %v93
    %311 = vmatpush1.msra.mxu0 %v92
    %312 = vmatprep.subr.mxu0 %v97
    %313 = vmatpush1.msra.mxu0 %v96
    %314 = vmatprep.subr.mxu0 %v101
    %315 = vmatpush1.msra.mxu0 %v100
    %316 = vmatprep.subr.mxu0 0.0
    %317 = vmatpush1.msra.mxu0 0.0
    %318 = vmatprep.subr.mxu0 0.0
    %319 = vmatpush1.msra.mxu0 0.0
    %320 = vmatprep.subr.mxu0 0.0
    %321 = vmatpush1.msra.mxu0 0.0
    %322 = vmatprep.subr.mxu0 0.0
    %323 = vmatpush1.msra.mxu0 0.0
    %324 = vmatprep.subr.mxu0 0.0
    %325 = vmatpush1.msra.mxu0 0.0
    %326 = vmatprep.subr.mxu0 0.0
    %327 = vmatpush1.msra.mxu0 0.0
    %328 = vmatprep.subr.mxu0 0.0
    %329 = vmatpush1.msra.mxu0 0.0
    %330 = vmatprep.subr.mxu0 0.0
    %331 = vmatpush1.msra.mxu0 0.0
    %332 = vmatprep.subr.mxu0 0.0
    %333 = vmatpush1.msra.mxu0 0.0
    %334 = vmatprep.subr.mxu0 0.0
    %335 = vmatpush1.msra.mxu0 0.0
    %336 = vmatprep.subr.mxu0 0.0
    %337 = vmatpush1.msra.mxu0 0.0
    %338 = vmatprep.subr.mxu0 0.0
    %339 = vmatpush1.msra.mxu0 0.0
    %340 = vmatprep.subr.mxu0 0.0
    %341 = vmatpush1.msra.mxu0 0.0
    %342 = vmatprep.subr.mxu0 0.0
    %343 = vmatpush1.msra.mxu0 0.0
    %344 = vmatprep.subr.mxu0 0.0
    %345 = vmatpush1.msra.mxu0 0.0
    %346 = vmatprep.subr.mxu0 0.0
    %347 = vmatpush1.msra.mxu0 0.0
    %348 = vmatprep.mubr.f32.mxu0 0.0
    %349 = vmatmul.mubr.f32.gmra.mrb[0].mxu0 %v277
    %v350 = vpop.f32.mrb[0].mxu0
    %v351 = vadd.f32 0.0, %v350
    %v352 = vpop.f32.mrb[0].mxu0
    %v353 = vadd.f32 0.0, %v352
    %354 = vdwg.mxu0
    %355 = vmatprep.subr.mxu0 %v43
    %356 = vmatpush1.msra.mxu0 %v42
    %357 = vmatprep.subr.mxu0 %v47
    %358 = vmatpush1.msra.mxu0 %v46
    %359 = vmatprep.subr.mxu0 %v51
    %360 = vmatpush1.msra.mxu0 %v50
    %361 = vmatprep.subr.mxu0 %v55
    %362 = vmatpush1.msra.mxu0 %v54
    %363 = vmatprep.subr.mxu0 %v59
    %364 = vmatpush1.msra.mxu0 %v58
    %365 = vmatprep.subr.mxu0 %v63
    %366 = vmatpush1.msra.mxu0 %v62
    %367 = vmatprep.subr.mxu0 %v67
    %368 = vmatpush1.msra.mxu0 %v66
    %369 = vmatprep.subr.mxu0 %v71
    %370 = vmatpush1.msra.mxu0 %v70
    %371 = vmatprep.subr.mxu0 %v75
    %372 = vmatpush1.msra.mxu0 %v74
    %373 = vmatprep.subr.mxu0 %v79
    %374 = vmatpush1.msra.mxu0 %v78
    %375 = vmatprep.subr.mxu0 %v83
    %376 = vmatpush1.msra.mxu0 %v82
    %377 = vmatprep.subr.mxu0 %v87
    %378 = vmatpush1.msra.mxu0 %v86
    %379 = vmatprep.subr.mxu0 %v91
    %380 = vmatpush1.msra.mxu0 %v90
    %381 = vmatprep.subr.mxu0 %v95
    %382 = vmatpush1.msra.mxu0 %v94
    %383 = vmatprep.subr.mxu0 %v99
    %384 = vmatpush1.msra.mxu0 %v98
    %385 = vmatprep.subr.mxu0 %v103
    %386 = vmatpush1.msra.mxu0 %v102
    %387 = vmatprep.subr.mxu0 0.0
    %388 = vmatpush1.msra.mxu0 0.0
    %389 = vmatprep.subr.mxu0 0.0
    %390 = vmatpush1.msra.mxu0 0.0
    %391 = vmatprep.subr.mxu0 0.0
    %392 = vmatpush1.msra.mxu0 0.0
    %393 = vmatprep.subr.mxu0 0.0
    %394 = vmatpush1.msra.mxu0 0.0
    %395 = vmatprep.subr.mxu0 0.0
    %396 = vmatpush1.msra.mxu0 0.0
    %397 = vmatprep.subr.mxu0 0.0
    %398 = vmatpush1.msra.mxu0 0.0
    %399 = vmatprep.subr.mxu0 0.0
    %400 = vmatpush1.msra.mxu0 0.0
    %401 = vmatprep.subr.mxu0 0.0
    %402 = vmatpush1.msra.mxu0 0.0
    %403 = vmatprep.subr.mxu0 0.0
    %404 = vmatpush1.msra.mxu0 0.0
    %405 = vmatprep.subr.mxu0 0.0
    %406 = vmatpush1.msra.mxu0 0.0
    %407 = vmatprep.subr.mxu0 0.0
    %408 = vmatpush1.msra.mxu0 0.0
    %409 = vmatprep.subr.mxu0 0.0
    %410 = vmatpush1.msra.mxu0 0.0
    %411 = vmatprep.subr.mxu0 0.0
    %412 = vmatpush1.msra.mxu0 0.0
    %413 = vmatprep.subr.mxu0 0.0
    %414 = vmatpush1.msra.mxu0 0.0
    %415 = vmatprep.subr.mxu0 0.0
    %416 = vmatpush1.msra.mxu0 0.0
    %417 = vmatprep.subr.mxu0 0.0
    %418 = vmatpush1.msra.mxu0 0.0
    %419 = vmatprep.mubr.f32.mxu0 0.0
    %420 = vmatmul.mubr.f32.gmra.mrb[0].mxu0 %v277
    %v421 = vpop.f32.mrb[0].mxu0
    %v422 = vadd.f32 0.0, %v421
    %v423 = vpop.f32.mrb[0].mxu0
    %v424 = vadd.f32 0.0, %v423
    %425 = vdwg.mxu0
    %v426 = vadd.f32 %v280, %v351
    %v427 = vadd.f32 %v281, %v353
    %v428 = vadd.f32 %v282, %v422
    %v429 = vadd.f32 %v283, %v424
    %v430 = vxor.u32 %v426, 2147483648
    %v431 = vmul.f32 %v430, 1.442695
    %v432 = vpow.pop %v431
    %v433 = vadd.f32 %v432, 1.0
    %v434 = vrcp.pop %v433
    %v435 = vmul.f32 1.0, %v434
    %v436 = vxor.u32 %v427, 2147483648
    %v437 = vmul.f32 %v436, 1.442695
    %v438 = vpow.pop %v437
    %v439 = vadd.f32 %v438, 1.0
    %v440 = vrcp.pop %v439
    %v441 = vmul.f32 1.0, %v440
    %v442 = vtanh.pop %v428
    %v443 = vxor.u32 %v429, 2147483648
    %v444 = vmul.f32 %v443, 1.442695
    %v445 = vpow.pop %v444
    %v446 = vadd.f32 %v445, 1.0
    %v447 = vrcp.pop %v446
    %v448 = vmul.f32 1.0, %v447
    %v449 = vmul.f32 %v441, %v275
    %v450 = vmul.f32 %v435, %v442
    %v451 = vadd.f32 %v449, %v450
    %v452 = vtanh.pop %v451
    %v453 = vmul.f32 %v448, %v452
    %s454 = scalar_lea.vmem [#allocation7], 8
    %455 = vst [vmem:[%s454] sm:$0xff] %v453
    %s456 = scalar_lea.vmem [#allocation2], 64
    %v457 = vld [vmem:[%s456] sm:$0xff]
    %v458 = vld [vmem:[%s456 + $0x8] sm:$0xff]
    %v459 = vld [vmem:[%s456 + $0x10] sm:$0xff]
    %v460 = vld [vmem:[%s456 + $0x18] sm:$0xff]
    %461 = vmatprep.subr.mxu0 %v41
    %462 = vmatpush1.msra.mxu0 %v40
    %463 = vmatprep.subr.mxu0 %v45
    %464 = vmatpush1.msra.mxu0 %v44
    %465 = vmatprep.subr.mxu0 %v49
    %466 = vmatpush1.msra.mxu0 %v48
    %467 = vmatprep.subr.mxu0 %v53
    %468 = vmatpush1.msra.mxu0 %v52
    %469 = vmatprep.subr.mxu0 %v57
    %470 = vmatpush1.msra.mxu0 %v56
    %471 = vmatprep.subr.mxu0 %v61
    %472 = vmatpush1.msra.mxu0 %v60
    %473 = vmatprep.subr.mxu0 %v65
    %474 = vmatpush1.msra.mxu0 %v64
    %475 = vmatprep.subr.mxu0 %v69
    %476 = vmatpush1.msra.mxu0 %v68
    %477 = vmatprep.subr.mxu0 %v73
    %478 = vmatpush1.msra.mxu0 %v72
    %479 = vmatprep.subr.mxu0 %v77
    %480 = vmatpush1.msra.mxu0 %v76
    %481 = vmatprep.subr.mxu0 %v81
    %482 = vmatpush1.msra.mxu0 %v80
    %483 = vmatprep.subr.mxu0 %v85
    %484 = vmatpush1.msra.mxu0 %v84
    %485 = vmatprep.subr.mxu0 %v89
    %486 = vmatpush1.msra.mxu0 %v88
    %487 = vmatprep.subr.mxu0 %v93
    %488 = vmatpush1.msra.mxu0 %v92
    %489 = vmatprep.subr.mxu0 %v97
    %490 = vmatpush1.msra.mxu0 %v96
    %491 = vmatprep.subr.mxu0 %v101
    %492 = vmatpush1.msra.mxu0 %v100
    %493 = vmatprep.subr.mxu0 0.0
    %494 = vmatpush1.msra.mxu0 0.0
    %495 = vmatprep.subr.mxu0 0.0
    %496 = vmatpush1.msra.mxu0 0.0
    %497 = vmatprep.subr.mxu0 0.0
    %498 = vmatpush1.msra.mxu0 0.0
    %499 = vmatprep.subr.mxu0 0.0
    %500 = vmatpush1.msra.mxu0 0.0
    %501 = vmatprep.subr.mxu0 0.0
    %502 = vmatpush1.msra.mxu0 0.0
    %503 = vmatprep.subr.mxu0 0.0
    %504 = vmatpush1.msra.mxu0 0.0
    %505 = vmatprep.subr.mxu0 0.0
    %506 = vmatpush1.msra.mxu0 0.0
    %507 = vmatprep.subr.mxu0 0.0
    %508 = vmatpush1.msra.mxu0 0.0
    %509 = vmatprep.subr.mxu0 0.0
    %510 = vmatpush1.msra.mxu0 0.0
    %511 = vmatprep.subr.mxu0 0.0
    %512 = vmatpush1.msra.mxu0 0.0
    %513 = vmatprep.subr.mxu0 0.0
    %514 = vmatpush1.msra.mxu0 0.0
    %515 = vmatprep.subr.mxu0 0.0
    %516 = vmatpush1.msra.mxu0 0.0
    %517 = vmatprep.subr.mxu0 0.0
    %518 = vmatpush1.msra.mxu0 0.0
    %519 = vmatprep.subr.mxu0 0.0
    %520 = vmatpush1.msra.mxu0 0.0
    %521 = vmatprep.subr.mxu0 0.0
    %522 = vmatpush1.msra.mxu0 0.0
    %523 = vmatprep.subr.mxu0 0.0
    %524 = vmatpush1.msra.mxu0 0.0
    %525 = vmatprep.mubr.f32.mxu0 0.0
    %526 = vmatmul.mubr.f32.gmra.mrb[0].mxu0 %v453
    %v527 = vpop.f32.mrb[0].mxu0
    %v528 = vadd.f32 0.0, %v527
    %v529 = vpop.f32.mrb[0].mxu0
    %v530 = vadd.f32 0.0, %v529
    %531 = vdwg.mxu0
    %532 = vmatprep.subr.mxu0 %v43
    %533 = vmatpush1.msra.mxu0 %v42
    %534 = vmatprep.subr.mxu0 %v47
    %535 = vmatpush1.msra.mxu0 %v46
    %536 = vmatprep.subr.mxu0 %v51
    %537 = vmatpush1.msra.mxu0 %v50
    %538 = vmatprep.subr.mxu0 %v55
    %539 = vmatpush1.msra.mxu0 %v54
    %540 = vmatprep.subr.mxu0 %v59
    %541 = vmatpush1.msra.mxu0 %v58
    %542 = vmatprep.subr.mxu0 %v63
    %543 = vmatpush1.msra.mxu0 %v62
    %544 = vmatprep.subr.mxu0 %v67
    %545 = vmatpush1.msra.mxu0 %v66
    %546 = vmatprep.subr.mxu0 %v71
    %547 = vmatpush1.msra.mxu0 %v70
    %548 = vmatprep.subr.mxu0 %v75
    %549 = vmatpush1.msra.mxu0 %v74
    %550 = vmatprep.subr.mxu0 %v79
    %551 = vmatpush1.msra.mxu0 %v78
    %552 = vmatprep.subr.mxu0 %v83
    %553 = vmatpush1.msra.mxu0 %v82
    %554 = vmatprep.subr.mxu0 %v87
    %555 = vmatpush1.msra.mxu0 %v86
    %556 = vmatprep.subr.mxu0 %v91
    %557 = vmatpush1.msra.mxu0 %v90
    %558 = vmatprep.subr.mxu0 %v95
    %559 = vmatpush1.msra.mxu0 %v94
    %560 = vmatprep.subr.mxu0 %v99
    %561 = vmatpush1.msra.mxu0 %v98
    %562 = vmatprep.subr.mxu0 %v103
    %563 = vmatpush1.msra.mxu0 %v102
    %564 = vmatprep.subr.mxu0 0.0
    %565 = vmatpush1.msra.mxu0 0.0
    %566 = vmatprep.subr.mxu0 0.0
    %567 = vmatpush1.msra.mxu0 0.0
    %568 = vmatprep.subr.mxu0 0.0
    %569 = vmatpush1.msra.mxu0 0.0
    %570 = vmatprep.subr.mxu0 0.0
    %571 = vmatpush1.msra.mxu0 0.0
    %572 = vmatprep.subr.mxu0 0.0
    %573 = vmatpush1.msra.mxu0 0.0
    %574 = vmatprep.subr.mxu0 0.0
    %575 = vmatpush1.msra.mxu0 0.0
    %576 = vmatprep.subr.mxu0 0.0
    %577 = vmatpush1.msra.mxu0 0.0
    %578 = vmatprep.subr.mxu0 0.0
    %579 = vmatpush1.msra.mxu0 0.0
    %580 = vmatprep.subr.mxu0 0.0
    %581 = vmatpush1.msra.mxu0 0.0
    %582 = vmatprep.subr.mxu0 0.0
    %583 = vmatpush1.msra.mxu0 0.0
    %584 = vmatprep.subr.mxu0 0.0
    %585 = vmatpush1.msra.mxu0 0.0
    %586 = vmatprep.subr.mxu0 0.0
    %587 = vmatpush1.msra.mxu0 0.0
    %588 = vmatprep.subr.mxu0 0.0
    %589 = vmatpush1.msra.mxu0 0.0
    %590 = vmatprep.subr.mxu0 0.0
    %591 = vmatpush1.msra.mxu0 0.0
    %592 = vmatprep.subr.mxu0 0.0
    %593 = vmatpush1.msra.mxu0 0.0
    %594 = vmatprep.subr.mxu0 0.0
    %595 = vmatpush1.msra.mxu0 0.0
    %596 = vmatprep.mubr.f32.mxu0 0.0
    %597 = vmatmul.mubr.f32.gmra.mrb[0].mxu0 %v453
    %v598 = vpop.f32.mrb[0].mxu0
    %v599 = vadd.f32 0.0, %v598
    %v600 = vpop.f32.mrb[0].mxu0
    %v601 = vadd.f32 0.0, %v600
    %602 = vdwg.mxu0
    %v603 = vadd.f32 %v457, %v528
    %v604 = vadd.f32 %v458, %v530
    %v605 = vadd.f32 %v459, %v599
    %v606 = vadd.f32 %v460, %v601
    %v607 = vxor.u32 %v603, 2147483648
    %v608 = vmul.f32 %v607, 1.442695
    %v609 = vpow.pop %v608
    %v610 = vadd.f32 %v609, 1.0
    %v611 = vrcp.pop %v610
    %v612 = vmul.f32 1.0, %v611
    %v613 = vxor.u32 %v604, 2147483648
    %v614 = vmul.f32 %v613, 1.442695
    %v615 = vpow.pop %v614
    %v616 = vadd.f32 %v615, 1.0
    %v617 = vrcp.pop %v616
    %v618 = vmul.f32 1.0, %v617
    %v619 = vtanh.pop %v605
    %v620 = vxor.u32 %v606, 2147483648
    %v621 = vmul.f32 %v620, 1.442695
    %v622 = vpow.pop %v621
    %v623 = vadd.f32 %v622, 1.0
    %v624 = vrcp.pop %v623
    %v625 = vmul.f32 1.0, %v624
    %v626 = vmul.f32 %v618, %v451
    %v627 = vmul.f32 %v612, %v619
    %v628 = vadd.f32 %v626, %v627
    %v629 = vtanh.pop %v628
    %v630 = vmul.f32 %v625, %v629
    %s631 = scalar_lea.vmem [#allocation7], 16
    %632 = vst [vmem:[%s631] sm:$0xff] %v630
    %s633 = scalar_lea.vmem [#allocation2], 96
    %v634 = vld [vmem:[%s633] sm:$0xff]
    %v635 = vld [vmem:[%s633 + $0x8] sm:$0xff]
    %v636 = vld [vmem:[%s633 + $0x10] sm:$0xff]
    %v637 = vld [vmem:[%s633 + $0x18] sm:$0xff]
    %638 = vmatprep.subr.mxu0 %v41
    %639 = vmatpush1.msra.mxu0 %v40
    %640 = vmatprep.subr.mxu0 %v45
    %641 = vmatpush1.msra.mxu0 %v44
    %642 = vmatprep.subr.mxu0 %v49
    %643 = vmatpush1.msra.mxu0 %v48
    %644 = vmatprep.subr.mxu0 %v53
    %645 = vmatpush1.msra.mxu0 %v52
    %646 = vmatprep.subr.mxu0 %v57
    %647 = vmatpush1.msra.mxu0 %v56
    %648 = vmatprep.subr.mxu0 %v61
    %649 = vmatpush1.msra.mxu0 %v60
    %650 = vmatprep.subr.mxu0 %v65
    %651 = vmatpush1.msra.mxu0 %v64
    %652 = vmatprep.subr.mxu0 %v69
    %653 = vmatpush1.msra.mxu0 %v68
    %654 = vmatprep.subr.mxu0 %v73
    %655 = vmatpush1.msra.mxu0 %v72
    %656 = vmatprep.subr.mxu0 %v77
    %657 = vmatpush1.msra.mxu0 %v76
    %658 = vmatprep.subr.mxu0 %v81
    %659 = vmatpush1.msra.mxu0 %v80
    %660 = vmatprep.subr.mxu0 %v85
    %661 = vmatpush1.msra.mxu0 %v84
    %662 = vmatprep.subr.mxu0 %v89
    %663 = vmatpush1.msra.mxu0 %v88
    %664 = vmatprep.subr.mxu0 %v93
    %665 = vmatpush1.msra.mxu0 %v92
    %666 = vmatprep.subr.mxu0 %v97
    %667 = vmatpush1.msra.mxu0 %v96
    %668 = vmatprep.subr.mxu0 %v101
    %669 = vmatpush1.msra.mxu0 %v100
    %670 = vmatprep.subr.mxu0 0.0
    %671 = vmatpush1.msra.mxu0 0.0
    %672 = vmatprep.subr.mxu0 0.0
    %673 = vmatpush1.msra.mxu0 0.0
    %674 = vmatprep.subr.mxu0 0.0
    %675 = vmatpush1.msra.mxu0 0.0
    %676 = vmatprep.subr.mxu0 0.0
    %677 = vmatpush1.msra.mxu0 0.0
    %678 = vmatprep.subr.mxu0 0.0
    %679 = vmatpush1.msra.mxu0 0.0
    %680 = vmatprep.subr.mxu0 0.0
    %681 = vmatpush1.msra.mxu0 0.0
    %682 = vmatprep.subr.mxu0 0.0
    %683 = vmatpush1.msra.mxu0 0.0
    %684 = vmatprep.subr.mxu0 0.0
    %685 = vmatpush1.msra.mxu0 0.0
    %686 = vmatprep.subr.mxu0 0.0
    %687 = vmatpush1.msra.mxu0 0.0
    %688 = vmatprep.subr.mxu0 0.0
    %689 = vmatpush1.msra.mxu0 0.0
    %690 = vmatprep.subr.mxu0 0.0
    %691 = vmatpush1.msra.mxu0 0.0
    %692 = vmatprep.subr.mxu0 0.0
    %693 = vmatpush1.msra.mxu0 0.0
    %694 = vmatprep.subr.mxu0 0.0
    %695 = vmatpush1.msra.mxu0 0.0
    %696 = vmatprep.subr.mxu0 0.0
    %697 = vmatpush1.msra.mxu0 0.0
    %698 = vmatprep.subr.mxu0 0.0
    %699 = vmatpush1.msra.mxu0 0.0
    %700 = vmatprep.subr.mxu0 0.0
    %701 = vmatpush1.msra.mxu0 0.0
    %702 = vmatprep.mubr.f32.mxu0 0.0
    %703 = vmatmul.mubr.f32.gmra.mrb[0].mxu0 %v630
    %v704 = vpop.f32.mrb[0].mxu0
    %v705 = vadd.f32 0.0, %v704
    %v706 = vpop.f32.mrb[0].mxu0
    %v707 = vadd.f32 0.0, %v706
    %708 = vdwg.mxu0
    %709 = vmatprep.subr.mxu0 %v43
    %710 = vmatpush1.msra.mxu0 %v42
    %711 = vmatprep.subr.mxu0 %v47
    %712 = vmatpush1.msra.mxu0 %v46
    %713 = vmatprep.subr.mxu0 %v51
    %714 = vmatpush1.msra.mxu0 %v50
    %715 = vmatprep.subr.mxu0 %v55
    %716 = vmatpush1.msra.mxu0 %v54
    %717 = vmatprep.subr.mxu0 %v59
    %718 = vmatpush1.msra.mxu0 %v58
    %719 = vmatprep.subr.mxu0 %v63
    %720 = vmatpush1.msra.mxu0 %v62
    %721 = vmatprep.subr.mxu0 %v67
    %722 = vmatpush1.msra.mxu0 %v66
    %723 = vmatprep.subr.mxu0 %v71
    %724 = vmatpush1.msra.mxu0 %v70
    %725 = vmatprep.subr.mxu0 %v75
    %726 = vmatpush1.msra.mxu0 %v74
    %727 = vmatprep.subr.mxu0 %v79
    %728 = vmatpush1.msra.mxu0 %v78
    %729 = vmatprep.subr.mxu0 %v83
    %730 = vmatpush1.msra.mxu0 %v82
    %731 = vmatprep.subr.mxu0 %v87
    %732 = vmatpush1.msra.mxu0 %v86
    %733 = vmatprep.subr.mxu0 %v91
    %734 = vmatpush1.msra.mxu0 %v90
    %735 = vmatprep.subr.mxu0 %v95
    %736 = vmatpush1.msra.mxu0 %v94
    %737 = vmatprep.subr.mxu0 %v99
    %738 = vmatpush1.msra.mxu0 %v98
    %739 = vmatprep.subr.mxu0 %v103
    %740 = vmatpush1.msra.mxu0 %v102
    %741 = vmatprep.subr.mxu0 0.0
    %742 = vmatpush1.msra.mxu0 0.0
    %743 = vmatprep.subr.mxu0 0.0
    %744 = vmatpush1.msra.mxu0 0.0
    %745 = vmatprep.subr.mxu0 0.0
    %746 = vmatpush1.msra.mxu0 0.0
    %747 = vmatprep.subr.mxu0 0.0
    %748 = vmatpush1.msra.mxu0 0.0
    %749 = vmatprep.subr.mxu0 0.0
    %750 = vmatpush1.msra.mxu0 0.0
    %751 = vmatprep.subr.mxu0 0.0
    %752 = vmatpush1.msra.mxu0 0.0
    %753 = vmatprep.subr.mxu0 0.0
    %754 = vmatpush1.msra.mxu0 0.0
    %755 = vmatprep.subr.mxu0 0.0
    %756 = vmatpush1.msra.mxu0 0.0
    %757 = vmatprep.subr.mxu0 0.0
    %758 = vmatpush1.msra.mxu0 0.0
    %759 = vmatprep.subr.mxu0 0.0
    %760 = vmatpush1.msra.mxu0 0.0
    %761 = vmatprep.subr.mxu0 0.0
    %762 = vmatpush1.msra.mxu0 0.0
    %763 = vmatprep.subr.mxu0 0.0
    %764 = vmatpush1.msra.mxu0 0.0
    %765 = vmatprep.subr.mxu0 0.0
    %766 = vmatpush1.msra.mxu0 0.0
    %767 = vmatprep.subr.mxu0 0.0
    %768 = vmatpush1.msra.mxu0 0.0
    %769 = vmatprep.subr.mxu0 0.0
    %770 = vmatpush1.msra.mxu0 0.0
    %771 = vmatprep.subr.mxu0 0.0
    %772 = vmatpush1.msra.mxu0 0.0
    %773 = vmatprep.mubr.f32.mxu0 0.0
    %774 = vmatmul.mubr.f32.gmra.mrb[0].mxu0 %v630
    %v775 = vpop.f32.mrb[0].mxu0
    %v776 = vadd.f32 0.0, %v775
    %v777 = vpop.f32.mrb[0].mxu0
    %v778 = vadd.f32 0.0, %v777
    %779 = vdwg.mxu0
    %v780 = vadd.f32 %v634, %v705
    %v781 = vadd.f32 %v635, %v707
    %v782 = vadd.f32 %v636, %v776
    %v783 = vadd.f32 %v637, %v778
    %v784 = vxor.u32 %v780, 2147483648
    %v785 = vmul.f32 %v784, 1.442695
    %v786 = vpow.pop %v785
    %v787 = vadd.f32 %v786, 1.0
    %v788 = vrcp.pop %v787
    %v789 = vmul.f32 1.0, %v788
    %v790 = vxor.u32 %v781, 2147483648
    %v791 = vmul.f32 %v790, 1.442695
    %v792 = vpow.pop %v791
    %v793 = vadd.f32 %v792, 1.0
    %v794 = vrcp.pop %v793
    %v795 = vmul.f32 1.0, %v794
    %v796 = vtanh.pop %v782
    %v797 = vxor.u32 %v783, 2147483648
    %v798 = vmul.f32 %v797, 1.442695
    %v799 = vpow.pop %v798
    %v800 = vadd.f32 %v799, 1.0
    %v801 = vrcp.pop %v800
    %v802 = vmul.f32 1.0, %v801
    %v803 = vmul.f32 %v795, %v628
    %v804 = vmul.f32 %v789, %v796
    %v805 = vadd.f32 %v803, %v804
    %v806 = vtanh.pop %v805
    %v807 = vmul.f32 %v802, %v806
    %s808 = scalar_lea.vmem [#allocation7], 24
    %809 = vst [vmem:[%s808] sm:$0xff] %v807
    %s810 = scalar_lea.vmem [#allocation2], 128
    %v811 = vld [vmem:[%s810] sm:$0xff]
    %v812 = vld [vmem:[%s810 + $0x8] sm:$0xff]
    %v813 = vld [vmem:[%s810 + $0x10] sm:$0xff]
    %v814 = vld [vmem:[%s810 + $0x18] sm:$0xff]
    %815 = vmatprep.subr.mxu0 %v41
    %816 = vmatpush1.msra.mxu0 %v40
    %817 = vmatprep.subr.mxu0 %v45
    %818 = vmatpush1.msra.mxu0 %v44
    %819 = vmatprep.subr.mxu0 %v49
    %820 = vmatpush1.msra.mxu0 %v48
    %821 = vmatprep.subr.mxu0 %v53
    %822 = vmatpush1.msra.mxu0 %v52
    %823 = vmatprep.subr.mxu0 %v57
    %824 = vmatpush1.msra.mxu0 %v56
    %825 = vmatprep.subr.mxu0 %v61
    %826 = vmatpush1.msra.mxu0 %v60
    %827 = vmatprep.subr.mxu0 %v65
    %828 = vmatpush1.msra.mxu0 %v64
    %829 = vmatprep.subr.mxu0 %v69
    %830 = vmatpush1.msra.mxu0 %v68
    %831 = vmatprep.subr.mxu0 %v73
    %832 = vmatpush1.msra.mxu0 %v72
    %833 = vmatprep.subr.mxu0 %v77
    %834 = vmatpush1.msra.mxu0 %v76
    %835 = vmatprep.subr.mxu0 %v81
    %836 = vmatpush1.msra.mxu0 %v80
    %837 = vmatprep.subr.mxu0 %v85
    %838 = vmatpush1.msra.mxu0 %v84
    %839 = vmatprep.subr.mxu0 %v89
    %840 = vmatpush1.msra.mxu0 %v88
    %841 = vmatprep.subr.mxu0 %v93
    %842 = vmatpush1.msra.mxu0 %v92
    %843 = vmatprep.subr.mxu0 %v97
    %844 = vmatpush1.msra.mxu0 %v96
    %845 = vmatprep.subr.mxu0 %v101
    %846 = vmatpush1.msra.mxu0 %v100
    %847 = vmatprep.subr.mxu0 0.0
    %848 = vmatpush1.msra.mxu0 0.0
    %849 = vmatprep.subr.mxu0 0.0
    %850 = vmatpush1.msra.mxu0 0.0
    %851 = vmatprep.subr.mxu0 0.0
    %852 = vmatpush1.msra.mxu0 0.0
    %853 = vmatprep.subr.mxu0 0.0
    %854 = vmatpush1.msra.mxu0 0.0
    %855 = vmatprep.subr.mxu0 0.0
    %856 = vmatpush1.msra.mxu0 0.0
    %857 = vmatprep.subr.mxu0 0.0
    %858 = vmatpush1.msra.mxu0 0.0
    %859 = vmatprep.subr.mxu0 0.0
    %860 = vmatpush1.msra.mxu0 0.0
    %861 = vmatprep.subr.mxu0 0.0
    %862 = vmatpush1.msra.mxu0 0.0
    %863 = vmatprep.subr.mxu0 0.0
    %864 = vmatpush1.msra.mxu0 0.0
    %865 = vmatprep.subr.mxu0 0.0
    %866 = vmatpush1.msra.mxu0 0.0
    %867 = vmatprep.subr.mxu0 0.0
    %868 = vmatpush1.msra.mxu0 0.0
    %869 = vmatprep.subr.mxu0 0.0
    %870 = vmatpush1.msra.mxu0 0.0
    %871 = vmatprep.subr.mxu0 0.0
    %872 = vmatpush1.msra.mxu0 0.0
    %873 = vmatprep.subr.mxu0 0.0
    %874 = vmatpush1.msra.mxu0 0.0
    %875 = vmatprep.subr.mxu0 0.0
    %876 = vmatpush1.msra.mxu0 0.0
    %877 = vmatprep.subr.mxu0 0.0
    %878 = vmatpush1.msra.mxu0 0.0
    %879 = vmatprep.mubr.f32.mxu0 0.0
    %880 = vmatmul.mubr.f32.gmra.mrb[0].mxu0 %v807
    %v881 = vpop.f32.mrb[0].mxu0
    %v882 = vadd.f32 0.0, %v881
    %v883 = vpop.f32.mrb[0].mxu0
    %v884 = vadd.f32 0.0, %v883
    %885 = vdwg.mxu0
    %886 = vmatprep.subr.mxu0 %v43
    %887 = vmatpush1.msra.mxu0 %v42
    %888 = vmatprep.subr.mxu0 %v47
    %889 = vmatpush1.msra.mxu0 %v46
    %890 = vmatprep.subr.mxu0 %v51
    %891 = vmatpush1.msra.mxu0 %v50
    %892 = vmatprep.subr.mxu0 %v55
    %893 = vmatpush1.msra.mxu0 %v54
    %894 = vmatprep.subr.mxu0 %v59
    %895 = vmatpush1.msra.mxu0 %v58
    %896 = vmatprep.subr.mxu0 %v63
    %897 = vmatpush1.msra.mxu0 %v62
    %898 = vmatprep.subr.mxu0 %v67
    %899 = vmatpush1.msra.mxu0 %v66
    %900 = vmatprep.subr.mxu0 %v71
    %901 = vmatpush1.msra.mxu0 %v70
    %902 = vmatprep.subr.mxu0 %v75
    %903 = vmatpush1.msra.mxu0 %v74
    %904 = vmatprep.subr.mxu0 %v79
    %905 = vmatpush1.msra.mxu0 %v78
    %906 = vmatprep.subr.mxu0 %v83
    %907 = vmatpush1.msra.mxu0 %v82
    %908 = vmatprep.subr.mxu0 %v87
    %909 = vmatpush1.msra.mxu0 %v86
    %910 = vmatprep.subr.mxu0 %v91
    %911 = vmatpush1.msra.mxu0 %v90
    %912 = vmatprep.subr.mxu0 %v95
    %913 = vmatpush1.msra.mxu0 %v94
    %914 = vmatprep.subr.mxu0 %v99
    %915 = vmatpush1.msra.mxu0 %v98
    %916 = vmatprep.subr.mxu0 %v103
    %917 = vmatpush1.msra.mxu0 %v102
    %918 = vmatprep.subr.mxu0 0.0
    %919 = vmatpush1.msra.mxu0 0.0
    %920 = vmatprep.subr.mxu0 0.0
    %921 = vmatpush1.msra.mxu0 0.0
    %922 = vmatprep.subr.mxu0 0.0
    %923 = vmatpush1.msra.mxu0 0.0
    %924 = vmatprep.subr.mxu0 0.0
    %925 = vmatpush1.msra.mxu0 0.0
    %926 = vmatprep.subr.mxu0 0.0
    %927 = vmatpush1.msra.mxu0 0.0
    %928 = vmatprep.subr.mxu0 0.0
    %929 = vmatpush1.msra.mxu0 0.0
    %930 = vmatprep.subr.mxu0 0.0
    %931 = vmatpush1.msra.mxu0 0.0
    %932 = vmatprep.subr.mxu0 0.0
    %933 = vmatpush1.msra.mxu0 0.0
    %934 = vmatprep.subr.mxu0 0.0
    %935 = vmatpush1.msra.mxu0 0.0
    %936 = vmatprep.subr.mxu0 0.0
    %937 = vmatpush1.msra.mxu0 0.0
    %938 = vmatprep.subr.mxu0 0.0
    %939 = vmatpush1.msra.mxu0 0.0
    %940 = vmatprep.subr.mxu0 0.0
    %941 = vmatpush1.msra.mxu0 0.0
    %942 = vmatprep.subr.mxu0 0.0
    %943 = vmatpush1.msra.mxu0 0.0
    %944 = vmatprep.subr.mxu0 0.0
    %945 = vmatpush1.msra.mxu0 0.0
    %946 = vmatprep.subr.mxu0 0.0
    %947 = vmatpush1.msra.mxu0 0.0
    %948 = vmatprep.subr.mxu0 0.0
    %949 = vmatpush1.msra.mxu0 0.0
    %950 = vmatprep.mubr.f32.mxu0 0.0
    %951 = vmatmul.mubr.f32.gmra.mrb[0].mxu0 %v807
    %v952 = vpop.f32.mrb[0].mxu0
    %v953 = vadd.f32 0.0, %v952
    %v954 = vpop.f32.mrb[0].mxu0
    %v955 = vadd.f32 0.0, %v954
    %956 = vdwg.mxu0
    %v957 = vadd.f32 %v811, %v882
    %v958 = vadd.f32 %v812, %v884
    %v959 = vadd.f32 %v813, %v953
    %v960 = vadd.f32 %v814, %v955
    %v961 = vxor.u32 %v957, 2147483648
    %v962 = vmul.f32 %v961, 1.442695
    %v963 = vpow.pop %v962
    %v964 = vadd.f32 %v963, 1.0
    %v965 = vrcp.pop %v964
    %v966 = vmul.f32 1.0, %v965
    %v967 = vxor.u32 %v958, 2147483648
    %v968 = vmul.f32 %v967, 1.442695
    %v969 = vpow.pop %v968
    %v970 = vadd.f32 %v969, 1.0
    %v971 = vrcp.pop %v970
    %v972 = vmul.f32 1.0, %v971
    %v973 = vtanh.pop %v959
    %v974 = vxor.u32 %v960, 2147483648
    %v975 = vmul.f32 %v974, 1.442695
    %v976 = vpow.pop %v975
    %v977 = vadd.f32 %v976, 1.0
    %v978 = vrcp.pop %v977
    %v979 = vmul.f32 1.0, %v978
    %v980 = vmul.f32 %v972, %v805
    %v981 = vmul.f32 %v966, %v973
    %v982 = vadd.f32 %v980, %v981
    %v983 = vtanh.pop %v982
    %v984 = vmul.f32 %v979, %v983
    %s985 = scalar_lea.vmem [#allocation7], 32
    %986 = vst [vmem:[%s985] sm:$0xff] %v984
    %s987 = scalar_lea.vmem [#allocation2], 160
    %v988 = vld [vmem:[%s987] sm:$0xff]
    %v989 = vld [vmem:[%s987 + $0x8] sm:$0xff]
    %v990 = vld [vmem:[%s987 + $0x10] sm:$0xff]
    %v991 = vld [vmem:[%s987 + $0x18] sm:$0xff]
    %992 = vmatprep.subr.mxu0 %v41
    %993 = vmatpush1.msra.mxu0 %v40
    %994 = vmatprep.subr.mxu0 %v45
    %995 = vmatpush1.msra.mxu0 %v44
    %996 = vmatprep.subr.mxu0 %v49
    %997 = vmatpush1.msra.mxu0 %v48
    %998 = vmatprep.subr.mxu0 %v53
    %999 = vmatpush1.msra.mxu0 %v52
    %1000 = vmatprep.subr.mxu0 %v57
    %1001 = vmatpush1.msra.mxu0 %v56
    %1002 = vmatprep.subr.mxu0 %v61
    %1003 = vmatpush1.msra.mxu0 %v60
    %1004 = vmatprep.subr.mxu0 %v65
    %1005 = vmatpush1.msra.mxu0 %v64
    %1006 = vmatprep.subr.mxu0 %v69
    %1007 = vmatpush1.msra.mxu0 %v68
    %1008 = vmatprep.subr.mxu0 %v73
    %1009 = vmatpush1.msra.mxu0 %v72
    %1010 = vmatprep.subr.mxu0 %v77
    %1011 = vmatpush1.msra.mxu0 %v76
    %1012 = vmatprep.subr.mxu0 %v81
    %1013 = vmatpush1.msra.mxu0 %v80
    %1014 = vmatprep.subr.mxu0 %v85
    %1015 = vmatpush1.msra.mxu0 %v84
    %1016 = vmatprep.subr.mxu0 %v89
    %1017 = vmatpush1.msra.mxu0 %v88
    %1018 = vmatprep.subr.mxu0 %v93
    %1019 = vmatpush1.msra.mxu0 %v92
    %1020 = vmatprep.subr.mxu0 %v97
    %1021 = vmatpush1.msra.mxu0 %v96
    %1022 = vmatprep.subr.mxu0 %v101
    %1023 = vmatpush1.msra.mxu0 %v100
    %1024 = vmatprep.subr.mxu0 0.0
    %1025 = vmatpush1.msra.mxu0 0.0
    %1026 = vmatprep.subr.mxu0 0.0
    %1027 = vmatpush1.msra.mxu0 0.0
    %1028 = vmatprep.subr.mxu0 0.0
    %1029 = vmatpush1.msra.mxu0 0.0
    %1030 = vmatprep.subr.mxu0 0.0
    %1031 = vmatpush1.msra.mxu0 0.0
    %1032 = vmatprep.subr.mxu0 0.0
    %1033 = vmatpush1.msra.mxu0 0.0
    %1034 = vmatprep.subr.mxu0 0.0
    %1035 = vmatpush1.msra.mxu0 0.0
    %1036 = vmatprep.subr.mxu0 0.0
    %1037 = vmatpush1.msra.mxu0 0.0
    %1038 = vmatprep.subr.mxu0 0.0
    %1039 = vmatpush1.msra.mxu0 0.0
    %1040 = vmatprep.subr.mxu0 0.0
    %1041 = vmatpush1.msra.mxu0 0.0
    %1042 = vmatprep.subr.mxu0 0.0
    %1043 = vmatpush1.msra.mxu0 0.0
    %1044 = vmatprep.subr.mxu0 0.0
    %1045 = vmatpush1.msra.mxu0 0.0
    %1046 = vmatprep.subr.mxu0 0.0
    %1047 = vmatpush1.msra.mxu0 0.0
    %1048 = vmatprep.subr.mxu0 0.0
    %1049 = vmatpush1.msra.mxu0 0.0
    %1050 = vmatprep.subr.mxu0 0.0
    %1051 = vmatpush1.msra.mxu0 0.0
    %1052 = vmatprep.subr.mxu0 0.0
    %1053 = vmatpush1.msra.mxu0 0.0
    %1054 = vmatprep.subr.mxu0 0.0
    %1055 = vmatpush1.msra.mxu0 0.0
    %1056 = vmatprep.mubr.f32.mxu0 0.0
    %1057 = vmatmul.mubr.f32.gmra.mrb[0].mxu0 %v984
    %v1058 = vpop.f32.mrb[0].mxu0
    %v1059 = vadd.f32 0.0, %v1058
    %v1060 = vpop.f32.mrb[0].mxu0
    %v1061 = vadd.f32 0.0, %v1060
    %1062 = vdwg.mxu0
    %1063 = vmatprep.subr.mxu0 %v43
    %1064 = vmatpush1.msra.mxu0 %v42
    %1065 = vmatprep.subr.mxu0 %v47
    %1066 = vmatpush1.msra.mxu0 %v46
    %1067 = vmatprep.subr.mxu0 %v51
    %1068 = vmatpush1.msra.mxu0 %v50
    %1069 = vmatprep.subr.mxu0 %v55
    %1070 = vmatpush1.msra.mxu0 %v54
    %1071 = vmatprep.subr.mxu0 %v59
    %1072 = vmatpush1.msra.mxu0 %v58
    %1073 = vmatprep.subr.mxu0 %v63
    %1074 = vmatpush1.msra.mxu0 %v62
    %1075 = vmatprep.subr.mxu0 %v67
    %1076 = vmatpush1.msra.mxu0 %v66
    %1077 = vmatprep.subr.mxu0 %v71
    %1078 = vmatpush1.msra.mxu0 %v70
    %1079 = vmatprep.subr.mxu0 %v75
    %1080 = vmatpush1.msra.mxu0 %v74
    %1081 = vmatprep.subr.mxu0 %v79
    %1082 = vmatpush1.msra.mxu0 %v78
    %1083 = vmatprep.subr.mxu0 %v83
    %1084 = vmatpush1.msra.mxu0 %v82
    %1085 = vmatprep.subr.mxu0 %v87
    %1086 = vmatpush1.msra.mxu0 %v86
    %1087 = vmatprep.subr.mxu0 %v91
    %1088 = vmatpush1.msra.mxu0 %v90
    %1089 = vmatprep.subr.mxu0 %v95
    %1090 = vmatpush1.msra.mxu0 %v94
    %1091 = vmatprep.subr.mxu0 %v99
    %1092 = vmatpush1.msra.mxu0 %v98
    %1093 = vmatprep.subr.mxu0 %v103
    %1094 = vmatpush1.msra.mxu0 %v102
    %1095 = vmatprep.subr.mxu0 0.0
    %1096 = vmatpush1.msra.mxu0 0.0
    %1097 = vmatprep.subr.mxu0 0.0
    %1098 = vmatpush1.msra.mxu0 0.0
    %1099 = vmatprep.subr.mxu0 0.0
    %1100 = vmatpush1.msra.mxu0 0.0
    %1101 = vmatprep.subr.mxu0 0.0
    %1102 = vmatpush1.msra.mxu0 0.0
    %1103 = vmatprep.subr.mxu0 0.0
    %1104 = vmatpush1.msra.mxu0 0.0
    %1105 = vmatprep.subr.mxu0 0.0
    %1106 = vmatpush1.msra.mxu0 0.0
    %1107 = vmatprep.subr.mxu0 0.0
    %1108 = vmatpush1.msra.mxu0 0.0
    %1109 = vmatprep.subr.mxu0 0.0
    %1110 = vmatpush1.msra.mxu0 0.0
    %1111 = vmatprep.subr.mxu0 0.0
    %1112 = vmatpush1.msra.mxu0 0.0
    %1113 = vmatprep.subr.mxu0 0.0
    %1114 = vmatpush1.msra.mxu0 0.0
    %1115 = vmatprep.subr.mxu0 0.0
    %1116 = vmatpush1.msra.mxu0 0.0
    %1117 = vmatprep.subr.mxu0 0.0
    %1118 = vmatpush1.msra.mxu0 0.0
    %1119 = vmatprep.subr.mxu0 0.0
    %1120 = vmatpush1.msra.mxu0 0.0
    %1121 = vmatprep.subr.mxu0 0.0
    %1122 = vmatpush1.msra.mxu0 0.0
    %1123 = vmatprep.subr.mxu0 0.0
    %1124 = vmatpush1.msra.mxu0 0.0
    %1125 = vmatprep.subr.mxu0 0.0
    %1126 = vmatpush1.msra.mxu0 0.0
    %1127 = vmatprep.mubr.f32.mxu0 0.0
    %1128 = vmatmul.mubr.f32.gmra.mrb[0].mxu0 %v984
    %v1129 = vpop.f32.mrb[0].mxu0
    %v1130 = vadd.f32 0.0, %v1129
    %v1131 = vpop.f32.mrb[0].mxu0
    %v1132 = vadd.f32 0.0, %v1131
    %1133 = vdwg.mxu0
    %v1134 = vadd.f32 %v988, %v1059
    %v1135 = vadd.f32 %v989, %v1061
    %v1136 = vadd.f32 %v990, %v1130
    %v1137 = vadd.f32 %v991, %v1132
    %v1138 = vxor.u32 %v1134, 2147483648
    %v1139 = vmul.f32 %v1138, 1.442695
    %v1140 = vpow.pop %v1139
    %v1141 = vadd.f32 %v1140, 1.0
    %v1142 = vrcp.pop %v1141
    %v1143 = vmul.f32 1.0, %v1142
    %v1144 = vxor.u32 %v1135, 2147483648
    %v1145 = vmul.f32 %v1144, 1.442695
    %v1146 = vpow.pop %v1145
    %v1147 = vadd.f32 %v1146, 1.0
    %v1148 = vrcp.pop %v1147
    %v1149 = vmul.f32 1.0, %v1148
    %v1150 = vtanh.pop %v1136
    %v1151 = vxor.u32 %v1137, 2147483648
    %v1152 = vmul.f32 %v1151, 1.442695
    %v1153 = vpow.pop %v1152
    %v1154 = vadd.f32 %v1153, 1.0
    %v1155 = vrcp.pop %v1154
    %v1156 = vmul.f32 1.0, %v1155
    %v1157 = vmul.f32 %v1149, %v982
    %v1158 = vmul.f32 %v1143, %v1150
    %v1159 = vadd.f32 %v1157, %v1158
    %v1160 = vtanh.pop %v1159
    %v1161 = vmul.f32 %v1156, %v1160
    %s1162 = scalar_lea.vmem [#allocation7], 40
    %1163 = vst [vmem:[%s1162] sm:$0xff] %v1161
    %s1164 = scalar_lea.vmem [#allocation2], 192
    %v1165 = vld [vmem:[%s1164] sm:$0xff]
    %v1166 = vld [vmem:[%s1164 + $0x8] sm:$0xff]
    %v1167 = vld [vmem:[%s1164 + $0x10] sm:$0xff]
    %v1168 = vld [vmem:[%s1164 + $0x18] sm:$0xff]
    %1169 = vmatprep.subr.mxu0 %v41
    %1170 = vmatpush1.msra.mxu0 %v40
    %1171 = vmatprep.subr.mxu0 %v45
    %1172 = vmatpush1.msra.mxu0 %v44
    %1173 = vmatprep.subr.mxu0 %v49
    %1174 = vmatpush1.msra.mxu0 %v48
    %1175 = vmatprep.subr.mxu0 %v53
    %1176 = vmatpush1.msra.mxu0 %v52
    %1177 = vmatprep.subr.mxu0 %v57
    %1178 = vmatpush1.msra.mxu0 %v56
    %1179 = vmatprep.subr.mxu0 %v61
    %1180 = vmatpush1.msra.mxu0 %v60
    %1181 = vmatprep.subr.mxu0 %v65
    %1182 = vmatpush1.msra.mxu0 %v64
    %1183 = vmatprep.subr.mxu0 %v69
    %1184 = vmatpush1.msra.mxu0 %v68
    %1185 = vmatprep.subr.mxu0 %v73
    %1186 = vmatpush1.msra.mxu0 %v72
    %1187 = vmatprep.subr.mxu0 %v77
    %1188 = vmatpush1.msra.mxu0 %v76
    %1189 = vmatprep.subr.mxu0 %v81
    %1190 = vmatpush1.msra.mxu0 %v80
    %1191 = vmatprep.subr.mxu0 %v85
    %1192 = vmatpush1.msra.mxu0 %v84
    %1193 = vmatprep.subr.mxu0 %v89
    %1194 = vmatpush1.msra.mxu0 %v88
    %1195 = vmatprep.subr.mxu0 %v93
    %1196 = vmatpush1.msra.mxu0 %v92
    %1197 = vmatprep.subr.mxu0 %v97
    %1198 = vmatpush1.msra.mxu0 %v96
    %1199 = vmatprep.subr.mxu0 %v101
    %1200 = vmatpush1.msra.mxu0 %v100
    %1201 = vmatprep.subr.mxu0 0.0
    %1202 = vmatpush1.msra.mxu0 0.0
    %1203 = vmatprep.subr.mxu0 0.0
    %1204 = vmatpush1.msra.mxu0 0.0
    %1205 = vmatprep.subr.mxu0 0.0
    %1206 = vmatpush1.msra.mxu0 0.0
    %1207 = vmatprep.subr.mxu0 0.0
    %1208 = vmatpush1.msra.mxu0 0.0
    %1209 = vmatprep.subr.mxu0 0.0
    %1210 = vmatpush1.msra.mxu0 0.0
    %1211 = vmatprep.subr.mxu0 0.0
    %1212 = vmatpush1.msra.mxu0 0.0
    %1213 = vmatprep.subr.mxu0 0.0
    %1214 = vmatpush1.msra.mxu0 0.0
    %1215 = vmatprep.subr.mxu0 0.0
    %1216 = vmatpush1.msra.mxu0 0.0
    %1217 = vmatprep.subr.mxu0 0.0
    %1218 = vmatpush1.msra.mxu0 0.0
    %1219 = vmatprep.subr.mxu0 0.0
    %1220 = vmatpush1.msra.mxu0 0.0
    %1221 = vmatprep.subr.mxu0 0.0
    %1222 = vmatpush1.msra.mxu0 0.0
    %1223 = vmatprep.subr.mxu0 0.0
    %1224 = vmatpush1.msra.mxu0 0.0
    %1225 = vmatprep.subr.mxu0 0.0
    %1226 = vmatpush1.msra.mxu0 0.0
    %1227 = vmatprep.subr.mxu0 0.0
    %1228 = vmatpush1.msra.mxu0 0.0
    %1229 = vmatprep.subr.mxu0 0.0
    %1230 = vmatpush1.msra.mxu0 0.0
    %1231 = vmatprep.subr.mxu0 0.0
    %1232 = vmatpush1.msra.mxu0 0.0
    %1233 = vmatprep.mubr.f32.mxu0 0.0
    %1234 = vmatmul.mubr.f32.gmra.mrb[0].mxu0 %v1161
    %v1235 = vpop.f32.mrb[0].mxu0
    %v1236 = vadd.f32 0.0, %v1235
    %v1237 = vpop.f32.mrb[0].mxu0
    %v1238 = vadd.f32 0.0, %v1237
    %1239 = vdwg.mxu0
    %1240 = vmatprep.subr.mxu0 %v43
    %1241 = vmatpush1.msra.mxu0 %v42
    %1242 = vmatprep.subr.mxu0 %v47
    %1243 = vmatpush1.msra.mxu0 %v46
    %1244 = vmatprep.subr.mxu0 %v51
    %1245 = vmatpush1.msra.mxu0 %v50
    %1246 = vmatprep.subr.mxu0 %v55
    %1247 = vmatpush1.msra.mxu0 %v54
    %1248 = vmatprep.subr.mxu0 %v59
    %1249 = vmatpush1.msra.mxu0 %v58
    %1250 = vmatprep.subr.mxu0 %v63
    %1251 = vmatpush1.msra.mxu0 %v62
    %1252 = vmatprep.subr.mxu0 %v67
    %1253 = vmatpush1.msra.mxu0 %v66
    %1254 = vmatprep.subr.mxu0 %v71
    %1255 = vmatpush1.msra.mxu0 %v70
    %1256 = vmatprep.subr.mxu0 %v75
    %1257 = vmatpush1.msra.mxu0 %v74
    %1258 = vmatprep.subr.mxu0 %v79
    %1259 = vmatpush1.msra.mxu0 %v78
    %1260 = vmatprep.subr.mxu0 %v83
    %1261 = vmatpush1.msra.mxu0 %v82
    %1262 = vmatprep.subr.mxu0 %v87
    %1263 = vmatpush1.msra.mxu0 %v86
    %1264 = vmatprep.subr.mxu0 %v91
    %1265 = vmatpush1.msra.mxu0 %v90
    %1266 = vmatprep.subr.mxu0 %v95
    %1267 = vmatpush1.msra.mxu0 %v94
    %1268 = vmatprep.subr.mxu0 %v99
    %1269 = vmatpush1.msra.mxu0 %v98
    %1270 = vmatprep.subr.mxu0 %v103
    %1271 = vmatpush1.msra.mxu0 %v102
    %1272 = vmatprep.subr.mxu0 0.0
    %1273 = vmatpush1.msra.mxu0 0.0
    %1274 = vmatprep.subr.mxu0 0.0
    %1275 = vmatpush1.msra.mxu0 0.0
    %1276 = vmatprep.subr.mxu0 0.0
    %1277 = vmatpush1.msra.mxu0 0.0
    %1278 = vmatprep.subr.mxu0 0.0
    %1279 = vmatpush1.msra.mxu0 0.0
    %1280 = vmatprep.subr.mxu0 0.0
    %1281 = vmatpush1.msra.mxu0 0.0
    %1282 = vmatprep.subr.mxu0 0.0
    %1283 = vmatpush1.msra.mxu0 0.0
    %1284 = vmatprep.subr.mxu0 0.0
    %1285 = vmatpush1.msra.mxu0 0.0
    %1286 = vmatprep.subr.mxu0 0.0
    %1287 = vmatpush1.msra.mxu0 0.0
    %1288 = vmatprep.subr.mxu0 0.0
    %1289 = vmatpush1.msra.mxu0 0.0
    %1290 = vmatprep.subr.mxu0 0.0
    %1291 = vmatpush1.msra.mxu0 0.0
    %1292 = vmatprep.subr.mxu0 0.0
    %1293 = vmatpush1.msra.mxu0 0.0
    %1294 = vmatprep.subr.mxu0 0.0
    %1295 = vmatpush1.msra.mxu0 0.0
    %1296 = vmatprep.subr.mxu0 0.0
    %1297 = vmatpush1.msra.mxu0 0.0
    %1298 = vmatprep.subr.mxu0 0.0
    %1299 = vmatpush1.msra.mxu0 0.0
    %1300 = vmatprep.subr.mxu0 0.0
    %1301 = vmatpush1.msra.mxu0 0.0
    %1302 = vmatprep.subr.mxu0 0.0
    %1303 = vmatpush1.msra.mxu0 0.0
    %1304 = vmatprep.mubr.f32.mxu0 0.0
    %1305 = vmatmul.mubr.f32.gmra.mrb[0].mxu0 %v1161
    %v1306 = vpop.f32.mrb[0].mxu0
    %v1307 = vadd.f32 0.0, %v1306
    %v1308 = vpop.f32.mrb[0].mxu0
    %v1309 = vadd.f32 0.0, %v1308
    %1310 = vdwg.mxu0
    %v1311 = vadd.f32 %v1165, %v1236
    %v1312 = vadd.f32 %v1166, %v1238
    %v1313 = vadd.f32 %v1167, %v1307
    %v1314 = vadd.f32 %v1168, %v1309
    %v1315 = vxor.u32 %v1311, 2147483648
    %v1316 = vmul.f32 %v1315, 1.442695
    %v1317 = vpow.pop %v1316
    %v1318 = vadd.f32 %v1317, 1.0
    %v1319 = vrcp.pop %v1318
    %v1320 = vmul.f32 1.0, %v1319
    %v1321 = vxor.u32 %v1312, 2147483648
    %v1322 = vmul.f32 %v1321, 1.442695
    %v1323 = vpow.pop %v1322
    %v1324 = vadd.f32 %v1323, 1.0
    %v1325 = vrcp.pop %v1324
    %v1326 = vmul.f32 1.0, %v1325
    %v1327 = vtanh.pop %v1313
    %v1328 = vxor.u32 %v1314, 2147483648
    %v1329 = vmul.f32 %v1328, 1.442695
    %v1330 = vpow.pop %v1329
    %v1331 = vadd.f32 %v1330, 1.0
    %v1332 = vrcp.pop %v1331
    %v1333 = vmul.f32 1.0, %v1332
    %v1334 = vmul.f32 %v1326, %v1159
    %v1335 = vmul.f32 %v1320, %v1327
    %v1336 = vadd.f32 %v1334, %v1335
    %v1337 = vtanh.pop %v1336
    %v1338 = vmul.f32 %v1333, %v1337
    %s1339 = scalar_lea.vmem [#allocation7], 48
    %1340 = vst [vmem:[%s1339] sm:$0xff] %v1338
    %s1341 = scalar_lea.vmem [#allocation2], 224
    %v1342 = vld [vmem:[%s1341] sm:$0xff]
    %v1343 = vld [vmem:[%s1341 + $0x8] sm:$0xff]
    %v1344 = vld [vmem:[%s1341 + $0x10] sm:$0xff]
    %v1345 = vld [vmem:[%s1341 + $0x18] sm:$0xff]
    %1346 = vmatprep.subr.mxu0 %v41
    %1347 = vmatpush1.msra.mxu0 %v40
    %1348 = vmatprep.subr.mxu0 %v45
    %1349 = vmatpush1.msra.mxu0 %v44
    %1350 = vmatprep.subr.mxu0 %v49
    %1351 = vmatpush1.msra.mxu0 %v48
    %1352 = vmatprep.subr.mxu0 %v53
    %1353 = vmatpush1.msra.mxu0 %v52
    %1354 = vmatprep.subr.mxu0 %v57
    %1355 = vmatpush1.msra.mxu0 %v56
    %1356 = vmatprep.subr.mxu0 %v61
    %1357 = vmatpush1.msra.mxu0 %v60
    %1358 = vmatprep.subr.mxu0 %v65
    %1359 = vmatpush1.msra.mxu0 %v64
    %1360 = vmatprep.subr.mxu0 %v69
    %1361 = vmatpush1.msra.mxu0 %v68
    %1362 = vmatprep.subr.mxu0 %v73
    %1363 = vmatpush1.msra.mxu0 %v72
    %1364 = vmatprep.subr.mxu0 %v77
    %1365 = vmatpush1.msra.mxu0 %v76
    %1366 = vmatprep.subr.mxu0 %v81
    %1367 = vmatpush1.msra.mxu0 %v80
    %1368 = vmatprep.subr.mxu0 %v85
    %1369 = vmatpush1.msra.mxu0 %v84
    %1370 = vmatprep.subr.mxu0 %v89
    %1371 = vmatpush1.msra.mxu0 %v88
    %1372 = vmatprep.subr.mxu0 %v93
    %1373 = vmatpush1.msra.mxu0 %v92
    %1374 = vmatprep.subr.mxu0 %v97
    %1375 = vmatpush1.msra.mxu0 %v96
    %1376 = vmatprep.subr.mxu0 %v101
    %1377 = vmatpush1.msra.mxu0 %v100
    %1378 = vmatprep.subr.mxu0 0.0
    %1379 = vmatpush1.msra.mxu0 0.0
    %1380 = vmatprep.subr.mxu0 0.0
    %1381 = vmatpush1.msra.mxu0 0.0
    %1382 = vmatprep.subr.mxu0 0.0
    %1383 = vmatpush1.msra.mxu0 0.0
    %1384 = vmatprep.subr.mxu0 0.0
    %1385 = vmatpush1.msra.mxu0 0.0
    %1386 = vmatprep.subr.mxu0 0.0
    %1387 = vmatpush1.msra.mxu0 0.0
    %1388 = vmatprep.subr.mxu0 0.0
    %1389 = vmatpush1.msra.mxu0 0.0
    %1390 = vmatprep.subr.mxu0 0.0
    %1391 = vmatpush1.msra.mxu0 0.0
    %1392 = vmatprep.subr.mxu0 0.0
    %1393 = vmatpush1.msra.mxu0 0.0
    %1394 = vmatprep.subr.mxu0 0.0
    %1395 = vmatpush1.msra.mxu0 0.0
    %1396 = vmatprep.subr.mxu0 0.0
    %1397 = vmatpush1.msra.mxu0 0.0
    %1398 = vmatprep.subr.mxu0 0.0
    %1399 = vmatpush1.msra.mxu0 0.0
    %1400 = vmatprep.subr.mxu0 0.0
    %1401 = vmatpush1.msra.mxu0 0.0
    %1402 = vmatprep.subr.mxu0 0.0
    %1403 = vmatpush1.msra.mxu0 0.0
    %1404 = vmatprep.subr.mxu0 0.0
    %1405 = vmatpush1.msra.mxu0 0.0
    %1406 = vmatprep.subr.mxu0 0.0
    %1407 = vmatpush1.msra.mxu0 0.0
    %1408 = vmatprep.subr.mxu0 0.0
    %1409 = vmatpush1.msra.mxu0 0.0
    %1410 = vmatprep.mubr.f32.mxu0 0.0
    %1411 = vmatmul.mubr.f32.gmra.mrb[0].mxu0 %v1338
    %v1412 = vpop.f32.mrb[0].mxu0
    %v1413 = vadd.f32 0.0, %v1412
    %v1414 = vpop.f32.mrb[0].mxu0
    %v1415 = vadd.f32 0.0, %v1414
    %1416 = vdwg.mxu0
    %1417 = vmatprep.subr.mxu0 %v43
    %1418 = vmatpush1.msra.mxu0 %v42
    %1419 = vmatprep.subr.mxu0 %v47
    %1420 = vmatpush1.msra.mxu0 %v46
    %1421 = vmatprep.subr.mxu0 %v51
    %1422 = vmatpush1.msra.mxu0 %v50
    %1423 = vmatprep.subr.mxu0 %v55
    %1424 = vmatpush1.msra.mxu0 %v54
    %1425 = vmatprep.subr.mxu0 %v59
    %1426 = vmatpush1.msra.mxu0 %v58
    %1427 = vmatprep.subr.mxu0 %v63
    %1428 = vmatpush1.msra.mxu0 %v62
    %1429 = vmatprep.subr.mxu0 %v67
    %1430 = vmatpush1.msra.mxu0 %v66
    %1431 = vmatprep.subr.mxu0 %v71
    %1432 = vmatpush1.msra.mxu0 %v70
    %1433 = vmatprep.subr.mxu0 %v75
    %1434 = vmatpush1.msra.mxu0 %v74
    %1435 = vmatprep.subr.mxu0 %v79
    %1436 = vmatpush1.msra.mxu0 %v78
    %1437 = vmatprep.subr.mxu0 %v83
    %1438 = vmatpush1.msra.mxu0 %v82
    %1439 = vmatprep.subr.mxu0 %v87
    %1440 = vmatpush1.msra.mxu0 %v86
    %1441 = vmatprep.subr.mxu0 %v91
    %1442 = vmatpush1.msra.mxu0 %v90
    %1443 = vmatprep.subr.mxu0 %v95
    %1444 = vmatpush1.msra.mxu0 %v94
    %1445 = vmatprep.subr.mxu0 %v99
    %1446 = vmatpush1.msra.mxu0 %v98
    %1447 = vmatprep.subr.mxu0 %v103
    %1448 = vmatpush1.msra.mxu0 %v102
    %1449 = vmatprep.subr.mxu0 0.0
    %1450 = vmatpush1.msra.mxu0 0.0
    %1451 = vmatprep.subr.mxu0 0.0
    %1452 = vmatpush1.msra.mxu0 0.0
    %1453 = vmatprep.subr.mxu0 0.0
    %1454 = vmatpush1.msra.mxu0 0.0
    %1455 = vmatprep.subr.mxu0 0.0
    %1456 = vmatpush1.msra.mxu0 0.0
    %1457 = vmatprep.subr.mxu0 0.0
    %1458 = vmatpush1.msra.mxu0 0.0
    %1459 = vmatprep.subr.mxu0 0.0
    %1460 = vmatpush1.msra.mxu0 0.0
    %1461 = vmatprep.subr.mxu0 0.0
    %1462 = vmatpush1.msra.mxu0 0.0
    %1463 = vmatprep.subr.mxu0 0.0
    %1464 = vmatpush1.msra.mxu0 0.0
    %1465 = vmatprep.subr.mxu0 0.0
    %1466 = vmatpush1.msra.mxu0 0.0
    %1467 = vmatprep.subr.mxu0 0.0
    %1468 = vmatpush1.msra.mxu0 0.0
    %1469 = vmatprep.subr.mxu0 0.0
    %1470 = vmatpush1.msra.mxu0 0.0
    %1471 = vmatprep.subr.mxu0 0.0
    %1472 = vmatpush1.msra.mxu0 0.0
    %1473 = vmatprep.subr.mxu0 0.0
    %1474 = vmatpush1.msra.mxu0 0.0
    %1475 = vmatprep.subr.mxu0 0.0
    %1476 = vmatpush1.msra.mxu0 0.0
    %1477 = vmatprep.subr.mxu0 0.0
    %1478 = vmatpush1.msra.mxu0 0.0
    %1479 = vmatprep.subr.mxu0 0.0
    %1480 = vmatpush1.msra.mxu0 0.0
    %1481 = vmatprep.mubr.f32.mxu0 0.0
    %1482 = vmatmul.mubr.f32.gmra.mrb[0].mxu0 %v1338
    %v1483 = vpop.f32.mrb[0].mxu0
    %v1484 = vadd.f32 0.0, %v1483
    %v1485 = vpop.f32.mrb[0].mxu0
    %v1486 = vadd.f32 0.0, %v1485
    %1487 = vdwg.mxu0
    %v1488 = vadd.f32 %v1342, %v1413
    %v1489 = vadd.f32 %v1343, %v1415
    %v1490 = vadd.f32 %v1344, %v1484
    %v1491 = vadd.f32 %v1345, %v1486
    %v1492 = vxor.u32 %v1488, 2147483648
    %v1493 = vmul.f32 %v1492, 1.442695
    %v1494 = vpow.pop %v1493
    %v1495 = vadd.f32 %v1494, 1.0
    %v1496 = vrcp.pop %v1495
    %v1497 = vmul.f32 1.0, %v1496
    %v1498 = vxor.u32 %v1489, 2147483648
    %v1499 = vmul.f32 %v1498, 1.442695
    %v1500 = vpow.pop %v1499
    %v1501 = vadd.f32 %v1500, 1.0
    %v1502 = vrcp.pop %v1501
    %v1503 = vmul.f32 1.0, %v1502
    %v1504 = vtanh.pop %v1490
    %v1505 = vxor.u32 %v1491, 2147483648
    %v1506 = vmul.f32 %v1505, 1.442695
    %v1507 = vpow.pop %v1506
    %v1508 = vadd.f32 %v1507, 1.0
    %v1509 = vrcp.pop %v1508
    %v1510 = vmul.f32 1.0, %v1509
    %v1511 = vmul.f32 %v1503, %v1336
    %v1512 = vmul.f32 %v1497, %v1504
    %v1513 = vadd.f32 %v1511, %v1512
    %v1514 = vtanh.pop %v1513
    %v1515 = vmul.f32 %v1510, %v1514
    %s1516 = scalar_lea.vmem [#allocation7], 56
    %1517 = vst [vmem:[%s1516] sm:$0xff] %v1515
    // Predicated region
    $region18: #{tpu_custom_call.1} parent=1 // pred_check
      _
    $region19: #{tpu_custom_call.1} parent=1 // pred_check_branch
      %1519 = sbr.rel (0) target = $region21
    $region20: #{tpu_custom_call.1} parent=1 // pred_region
      %s1521 = ssub.s32 1024, 1024
      %1522 = vsyncadd [#allocation4], %s1521
      %s1523 = sshll.u32 [#allocation7], 4
      %s1524 = int_to_ptr.vmem [resolvable:$true] %s1523
      %1529 = dma.vmem_to_hbm [thread:$0]  %s1524, 1024, %s2, [#allocation4], 128, 128, 8
    $region21: #{tpu_custom_call.1} parent=1 // pred_fallthru
      _
    // Predicated region
    $region22: #{tpu_custom_call.1} parent=1 // pred_check
      _
    $region23: #{tpu_custom_call.1} parent=1 // pred_check_branch
      %1531 = sbr.rel (0) target = $region25
    $region24: #{tpu_custom_call.1} parent=1 // pred_region
      %1532 = dma.done [#allocation4], 1024
    $region25: #{tpu_custom_call.1} parent=1 // pred_fallthru
      _
    %1533 = vsyncpa [#allocation3], 1
    %1534 = vsyncpa [#allocation6], 1
    %1535 = vsyncpa [#allocation4], 1

</llo_original>
